<compile_context>
chip_gen: v7x
topology: tpu7x:2x2x1
jax: 0.10.0
libtpu: 0.0.40
codegen_flags: <defaults>
</compile_context>

<pallas_src>
import jax
import jax.numpy as jnp
from jax.experimental import pallas as pl
from jax.experimental.pallas import tpu as pltpu

_VMEM_LIMIT = 32 * 1024 * 1024   # safe on v5e/v6e/v7x; our tiles use < 8 MiB
_CONV_ROW_TILE = 1024            # <= ~1024 keeps v7x (64 MiB VMEM) comfortable
_HEAD_ROW_TILE = 512


def _round_up(x, m):
    return (x + m - 1) // m * m


def _pad_rows(m, rows_p):
    pad = rows_p - m.shape[0]
    return m if pad == 0 else jnp.pad(m, ((0, pad), (0, 0)))


def _opt_kwargs(flops, bytes_accessed, transcendentals=0):
    """compiler_params + cost_estimate kwargs (best-effort across jax versions)."""
    kw = {}
    cp_cls = getattr(pltpu, "CompilerParams", None) or getattr(pltpu, "TPUCompilerParams", None)
    if cp_cls is not None:
        kw["compiler_params"] = cp_cls(
            dimension_semantics=("parallel",),
            vmem_limit_bytes=_VMEM_LIMIT,
        )
    if hasattr(pl, "CostEstimate"):
        kw["cost_estimate"] = pl.CostEstimate(
            flops=int(flops),
            bytes_accessed=int(bytes_accessed),
            transcendentals=int(transcendentals),
        )
    return kw


# ----------------------------------------------------------------------------
# Pallas kernels
# ----------------------------------------------------------------------------
def conv_pool_relu_kernel(a0_ref, a1_ref, a2_ref, a3_ref, w_ref, shift_ref, o_ref):
    """Fused conv-as-matmul over 4 pool phases -> 2x2 max-pool -> +shift -> ReLU.

    The BN scale is pre-folded into `w` (applied before the max, so no sign
    assumption); the per-channel (bias*scale + BN shift) constant commutes with
    the max and is added afterwards.
    """
    w = w_ref[...]
    z0 = jnp.dot(a0_ref[...], w, preferred_element_type=jnp.float32)
    z1 = jnp.dot(a1_ref[...], w, preferred_element_type=jnp.float32)
    z2 = jnp.dot(a2_ref[...], w, preferred_element_type=jnp.float32)
    z3 = jnp.dot(a3_ref[...], w, preferred_element_type=jnp.float32)
    z = jnp.maximum(jnp.maximum(z0, z1), jnp.maximum(z2, z3)) + shift_ref[...]
    o_ref[...] = jnp.maximum(z, 0.0)


def head_kernel(x_ref, w1_ref, shift1_ref, w2_ref, b2_ref, o_ref):
    """fc1(+BN1 folded) -> ReLU -> [dropout=identity] -> out -> ReLU -> log_softmax."""
    h = jnp.dot(x_ref[...], w1_ref[...], preferred_element_type=jnp.float32)
    h = jnp.maximum(h + shift1_ref[...], 0.0)
    z = jnp.dot(h.astype(w2_ref.dtype), w2_ref[...],
                preferred_element_type=jnp.float32)
    z = jnp.maximum(z + b2_ref[...], 0.0)
    m = jnp.max(z, axis=-1, keepdims=True)
    lse = jnp.log(jnp.sum(jnp.exp(z - m), axis=-1, keepdims=True)) + m
    o_ref[...] = z - lse


# ----------------------------------------------------------------------------
# pallas_call wrappers (row-tiled, pipelined)
# ----------------------------------------------------------------------------
def conv_pool_stage(phases, w_eff, shift):
    rows, kdim = phases[0].shape
    cout = w_eff.shape[1]
    tr = min(_CONV_ROW_TILE, _round_up(rows, 8))
    rows_p = _round_up(rows, tr)
    phases = [_pad_rows(a, rows_p).astype(jnp.bfloat16) for a in phases]
    w_eff = w_eff.astype(jnp.bfloat16)
    shift = shift.reshape(1, cout).astype(jnp.float32)

    a_spec = pl.BlockSpec((tr, kdim), lambda i: (i, 0))
    out = pl.pallas_call(
        conv_pool_relu_kernel,
        out_shape=jax.ShapeDtypeStruct((rows_p, cout), jnp.float32),
        grid=(rows_p // tr,),
        in_specs=[a_spec, a_spec, a_spec, a_spec,
                  pl.BlockSpec((kdim, cout), lambda i: (0, 0)),
                  pl.BlockSpec((1, cout), lambda i: (0, 0))],
        out_specs=pl.BlockSpec((tr, cout), lambda i: (i, 0)),
        **_opt_kwargs(
            flops=4 * 2 * rows_p * kdim * cout,
            bytes_accessed=4 * rows_p * kdim * 2 + kdim * cout * 2
                           + rows_p * cout * 4),
    )(*phases, w_eff, shift)
    return out[:rows]


def head(flat, w1_eff, shift1, w2, b2):
    n, d_in = flat.shape
    d_h = w1_eff.shape[1]
    d_out = w2.shape[1]
    tr = min(_HEAD_ROW_TILE, _round_up(n, 8))
    rows_p = _round_up(n, tr)
    flat_p = _pad_rows(flat, rows_p).astype(jnp.bfloat16)
    out = pl.pallas_call(
        head_kernel,
        out_shape=jax.ShapeDtypeStruct((rows_p, d_out), jnp.float32),
        grid=(rows_p // tr,),
        in_specs=[
            pl.BlockSpec((tr, d_in), lambda i: (i, 0)),
            pl.BlockSpec((d_in, d_h), lambda i: (0, 0)),
            pl.BlockSpec((1, d_h), lambda i: (0, 0)),
            pl.BlockSpec((d_h, d_out), lambda i: (0, 0)),
            pl.BlockSpec((1, d_out), lambda i: (0, 0)),
        ],
        out_specs=pl.BlockSpec((tr, d_out), lambda i: (i, 0)),
        **_opt_kwargs(
            flops=2 * rows_p * (d_in * d_h + d_h * d_out),
            bytes_accessed=rows_p * d_in * 2 + d_in * d_h * 2 + d_h * d_out * 2
                           + rows_p * d_out * 4,
            transcendentals=rows_p * (d_out + 1)),
    )(
        flat_p,
        w1_eff.astype(jnp.bfloat16),
        shift1.reshape(1, d_h).astype(jnp.float32),
        w2.astype(jnp.bfloat16),
        b2.reshape(1, d_out).astype(jnp.float32),
    )
    return out[:n]


# ----------------------------------------------------------------------------
# Glue (XLA-side data movement / parameter folding only)
# ----------------------------------------------------------------------------
def _tap_patches(x_nhwc, k):
    """im2col with tap-major ordering (kh, kw, ci) -> (N, Ho, Wo, K*K*C)."""
    n, h, w, c = x_nhwc.shape
    ho, wo = h - k + 1, w - k + 1
    taps = [x_nhwc[:, kh:kh + ho, kw:kw + wo, :]
            for kh in range(k) for kw in range(k)]
    return jnp.concatenate(taps, axis=-1)


def _pool_phases(patches):
    """Split conv-output patch rows by 2x2 pool phase -> 4 x (N*Ho/2*Wo/2, K)."""
    n, ho, wo, kdim = patches.shape
    rows = n * (ho // 2) * (wo // 2)
    return [patches[:, a::2, b::2, :].reshape(rows, kdim)
            for a in (0, 1) for b in (0, 1)]


def _conv_weight_matrix(w_oihw):
    """PyTorch (Cout,Cin,KH,KW) -> (KH*KW*Cin, Cout), matching tap-major patches."""
    cout, cin, kh, kw = w_oihw.shape
    return jnp.transpose(w_oihw, (2, 3, 1, 0)).reshape(kh * kw * cin, cout)


def init_params(key):
    ks = jax.random.split(key, 16)

    def u(k, shape, scale):
        return jax.random.uniform(k, shape, jnp.float32, -scale, scale)

    return {
        # PyTorch layouts: conv (Cout, Cin, KH, KW); linear (out, in)
        "conv1_w": u(ks[0], (16, 1, 5, 5), 0.2),
        "conv1_b": u(ks[1], (16,), 0.2),
        "conv2_w": u(ks[2], (32, 16, 5, 5), 0.05),
        "conv2_b": u(ks[3], (32,), 0.05),
        "bn2_gamma": 1.0 + u(ks[4], (32,), 0.3),
        "bn2_beta": u(ks[5], (32,), 0.1),
        "bn2_mean": u(ks[6], (32,), 0.1),
        "bn2_var": 1.0 + u(ks[7], (32,), 0.3),
        "fc1_w": u(ks[8], (120, 32 * 4 * 4), 0.05),
        "fc1_b": u(ks[9], (120,), 0.05),
        "bn1_gamma": 1.0 + u(ks[10], (120,), 0.3),
        "bn1_beta": u(ks[11], (120,), 0.1),
        "bn1_mean": u(ks[12], (120,), 0.1),
        "bn1_var": 1.0 + u(ks[13], (120,), 0.3),
        "out_w": u(ks[14], (10, 120), 0.1),
        "out_b": u(ks[15], (10,), 0.1),
    }


def myconv_forward(x_nchw, p):
    eps = 1e-5
    x = x_nchw.astype(jnp.float32)
    n = x.shape[0]
    x_nhwc = jnp.transpose(x, (0, 2, 3, 1))                      # (N, 28, 28, 1)

    # --- conv1 -> maxpool(2) -> relu (single fused kernel) --------------------
    patches1 = _tap_patches(x_nhwc, 5)                           # (N, 24, 24, 25)
    w1 = _conv_weight_matrix(p["conv1_w"])                       # (25, 16)
    y1 = conv_pool_stage(_pool_phases(patches1), w1, p["conv1_b"])
    x1 = y1.reshape(n, 12, 12, 16)

    # --- conv2 -> BN2d(eval, folded) -> maxpool(2) -> relu (fused kernel) -----
    s2 = p["bn2_gamma"] / jnp.sqrt(p["bn2_var"] + eps)
    t2 = p["bn2_beta"] - p["bn2_mean"] * s2
    patches2 = _tap_patches(x1, 5)                               # (N, 8, 8, 400)
    w2 = _conv_weight_matrix(p["conv2_w"]) * s2[None, :]         # BN scale folded
    shift2 = p["conv2_b"] * s2 + t2
    y2 = conv_pool_stage(_pool_phases(patches2), w2, shift2)
    x2 = y2.reshape(n, 4, 4, 32)

    # --- flatten exactly like torch (channel-major: N, C*H*W) -----------------
    flat = jnp.transpose(x2, (0, 3, 1, 2)).reshape(n, 32 * 4 * 4)

    # --- fc1(+BN1 folded) -> relu -> dropout(id) -> out -> relu -> log_softmax
    s1 = p["bn1_gamma"] / jnp.sqrt(p["bn1_var"] + eps)
    t1 = p["bn1_beta"] - p["bn1_mean"] * s1
    w_fc1 = p["fc1_w"].T * s1[None, :]
    shift_fc1 = p["fc1_b"] * s1 + t1
    return head(flat, w_fc1, shift_fc1, p["out_w"].T, p["out_b"])


if __name__ == "__main__":
    key = jax.random.PRNGKey(0)
    kx, kp = jax.random.split(key)
    x = jax.random.normal(kx, (2, 1, 28, 28), jnp.float32)       # NCHW, like PyTorch
    params = init_params(kp)

    out = jax.jit(myconv_forward)(x, params)
    out = jax.block_until_ready(out)

    assert out.shape == (2, 10) and out.dtype == jnp.float32
    # log_softmax rows must exponentiate-sum to 1
    assert jnp.allclose(jnp.sum(jnp.exp(out), axis=1), 1.0, atol=1e-4)
    print("KERNEL_OK")
</pallas_src>

<mosaic_0001>
module attributes {stable_mosaic.version = 11 : i64} {
  func.func @conv_pool_relu_kernel(%arg0: i32, %arg1: memref<288x25xbf16, #tpu.memory_space<vmem>>, %arg2: memref<288x25xbf16, #tpu.memory_space<vmem>>, %arg3: memref<288x25xbf16, #tpu.memory_space<vmem>>, %arg4: memref<288x25xbf16, #tpu.memory_space<vmem>>, %arg5: memref<25x16xbf16, #tpu.memory_space<vmem>>, %arg6: memref<1x16xf32, #tpu.memory_space<vmem>>, %arg7: memref<288x16xf32, #tpu.memory_space<vmem>>) attributes {dimension_semantics = [#tpu.dimension_semantics<parallel>], iteration_bounds = array<i64: 1>, scalar_prefetch = 0 : i64, scratch_operands = 0 : i64, tpu.core_type = #tpu.core_type<tc>, window_params = [{transform_indices = @transform_0, window_bounds = array<i64: 288, 25>}, {transform_indices = @transform_1, window_bounds = array<i64: 288, 25>}, {transform_indices = @transform_2, window_bounds = array<i64: 288, 25>}, {transform_indices = @transform_3, window_bounds = array<i64: 288, 25>}, {pipeline_mode = #tpu.pipeline_mode<synchronous>, transform_indices = @transform_4, window_bounds = array<i64: 25, 16>}, {pipeline_mode = #tpu.pipeline_mode<synchronous>, transform_indices = @transform_5, window_bounds = array<i64: 1, 16>}, {transform_indices = @transform_6, window_bounds = array<i64: 288, 16>}]} {
    %c0 = arith.constant 0 : index
    %c0_0 = arith.constant 0 : index
    %0 = vector.load %arg5[%c0, %c0_0] : memref<25x16xbf16, #tpu.memory_space<vmem>>, vector<25x16xbf16>
    %c0_1 = arith.constant 0 : index
    %c0_2 = arith.constant 0 : index
    %1 = vector.load %arg1[%c0_1, %c0_2] : memref<288x25xbf16, #tpu.memory_space<vmem>>, vector<288x25xbf16>
    %cst = arith.constant dense<0.000000e+00> : vector<288x16xf32>
    %2 = tpu.matmul %1, %0, %cst {dimension_numbers = #tpu.dot_dimension_numbers<[1], [0], [0], [1], [0, 0, 1, 1], [], []>} : vector<288x25xbf16>, vector<25x16xbf16>, vector<288x16xf32> -> vector<288x16xf32>
    %c0_3 = arith.constant 0 : index
    %c0_4 = arith.constant 0 : index
    %3 = vector.load %arg2[%c0_3, %c0_4] : memref<288x25xbf16, #tpu.memory_space<vmem>>, vector<288x25xbf16>
    %cst_5 = arith.constant dense<0.000000e+00> : vector<288x16xf32>
    %4 = tpu.matmul %3, %0, %cst_5 {dimension_numbers = #tpu.dot_dimension_numbers<[1], [0], [0], [1], [0, 0, 1, 1], [], []>} : vector<288x25xbf16>, vector<25x16xbf16>, vector<288x16xf32> -> vector<288x16xf32>
    %c0_6 = arith.constant 0 : index
    %c0_7 = arith.constant 0 : index
    %5 = vector.load %arg3[%c0_6, %c0_7] : memref<288x25xbf16, #tpu.memory_space<vmem>>, vector<288x25xbf16>
    %cst_8 = arith.constant dense<0.000000e+00> : vector<288x16xf32>
    %6 = tpu.matmul %5, %0, %cst_8 {dimension_numbers = #tpu.dot_dimension_numbers<[1], [0], [0], [1], [0, 0, 1, 1], [], []>} : vector<288x25xbf16>, vector<25x16xbf16>, vector<288x16xf32> -> vector<288x16xf32>
    %c0_9 = arith.constant 0 : index
    %c0_10 = arith.constant 0 : index
    %7 = vector.load %arg4[%c0_9, %c0_10] : memref<288x25xbf16, #tpu.memory_space<vmem>>, vector<288x25xbf16>
    %cst_11 = arith.constant dense<0.000000e+00> : vector<288x16xf32>
    %8 = tpu.matmul %7, %0, %cst_11 {dimension_numbers = #tpu.dot_dimension_numbers<[1], [0], [0], [1], [0, 0, 1, 1], [], []>} : vector<288x25xbf16>, vector<25x16xbf16>, vector<288x16xf32> -> vector<288x16xf32>
    %9 = arith.maximumf %2, %4 : vector<288x16xf32>
    %10 = arith.maximumf %6, %8 : vector<288x16xf32>
    %11 = arith.maximumf %9, %10 : vector<288x16xf32>
    %c0_12 = arith.constant 0 : index
    %c0_13 = arith.constant 0 : index
    %12 = vector.load %arg6[%c0_12, %c0_13] : memref<1x16xf32, #tpu.memory_space<vmem>>, vector<1x16xf32>
    %13 = vector.broadcast %12 : vector<1x16xf32> to vector<288x16xf32>
    %14 = arith.addf %11, %13 : vector<288x16xf32>
    %cst_14 = arith.constant 0.000000e+00 : f32
    %15 = vector.broadcast %cst_14 : f32 to vector<288x16xf32>
    %16 = arith.maximumf %14, %15 : vector<288x16xf32>
    %c0_15 = arith.constant 0 : index
    %c0_16 = arith.constant 0 : index
    %17 = vector.load %arg7[%c0_15, %c0_16] : memref<288x16xf32, #tpu.memory_space<vmem>>, vector<288x16xf32>
    tpu.vector_store %arg7[%c0_15, %c0_16], %16 {strides = array<i32>} : memref<288x16xf32, #tpu.memory_space<vmem>>, vector<288x16xf32>,
    return
  }
  func.func @transform_0(%arg0: i32) -> (i32, i32) {
    %c0_i32 = arith.constant 0 : i32
    %c0_i32_0 = arith.constant 0 : i32
    return %arg0, %c0_i32 : i32, i32
  }
  func.func @transform_1(%arg0: i32) -> (i32, i32) {
    %c0_i32 = arith.constant 0 : i32
    %c0_i32_0 = arith.constant 0 : i32
    return %arg0, %c0_i32 : i32, i32
  }
  func.func @transform_2(%arg0: i32) -> (i32, i32) {
    %c0_i32 = arith.constant 0 : i32
    %c0_i32_0 = arith.constant 0 : i32
    return %arg0, %c0_i32 : i32, i32
  }
  func.func @transform_3(%arg0: i32) -> (i32, i32) {
    %c0_i32 = arith.constant 0 : i32
    %c0_i32_0 = arith.constant 0 : i32
    return %arg0, %c0_i32 : i32, i32
  }
  func.func @transform_4(%arg0: i32) -> (i32, i32) {
    %c0_i32 = arith.constant 0 : i32
    %c0_i32_0 = arith.constant 0 : i32
    %c0_i32_1 = arith.constant 0 : i32
    return %c0_i32, %c0_i32_0 : i32, i32
  }
  func.func @transform_5(%arg0: i32) -> (i32, i32) {
    %c0_i32 = arith.constant 0 : i32
    %c0_i32_0 = arith.constant 0 : i32
    %c0_i32_1 = arith.constant 0 : i32
    return %c0_i32, %c0_i32_0 : i32, i32
  }
  func.func @transform_6(%arg0: i32) -> (i32, i32) {
    %c0_i32 = arith.constant 0 : i32
    %c0_i32_0 = arith.constant 0 : i32
    return %arg0, %c0_i32 : i32, i32
  }
}

module attributes {stable_mosaic.version = 11 : i64} {
  func.func @conv_pool_relu_kernel(%arg0: i32, %arg1: memref<32x400xbf16, #tpu.memory_space<vmem>>, %arg2: memref<32x400xbf16, #tpu.memory_space<vmem>>, %arg3: memref<32x400xbf16, #tpu.memory_space<vmem>>, %arg4: memref<32x400xbf16, #tpu.memory_space<vmem>>, %arg5: memref<400x32xbf16, #tpu.memory_space<vmem>>, %arg6: memref<1x32xf32, #tpu.memory_space<vmem>>, %arg7: memref<32x32xf32, #tpu.memory_space<vmem>>) attributes {dimension_semantics = [#tpu.dimension_semantics<parallel>], iteration_bounds = array<i64: 1>, scalar_prefetch = 0 : i64, scratch_operands = 0 : i64, tpu.core_type = #tpu.core_type<tc>, window_params = [{transform_indices = @transform_0, window_bounds = array<i64: 32, 400>}, {transform_indices = @transform_1, window_bounds = array<i64: 32, 400>}, {transform_indices = @transform_2, window_bounds = array<i64: 32, 400>}, {transform_indices = @transform_3, window_bounds = array<i64: 32, 400>}, {pipeline_mode = #tpu.pipeline_mode<synchronous>, transform_indices = @transform_4, window_bounds = array<i64: 400, 32>}, {pipeline_mode = #tpu.pipeline_mode<synchronous>, transform_indices = @transform_5, window_bounds = array<i64: 1, 32>}, {transform_indices = @transform_6, window_bounds = array<i64: 32, 32>}]} {
    %c0 = arith.constant 0 : index
    %c0_0 = arith.constant 0 : index
    %0 = vector.load %arg5[%c0, %c0_0] : memref<400x32xbf16, #tpu.memory_space<vmem>>, vector<400x32xbf16>
    %c0_1 = arith.constant 0 : index
    %c0_2 = arith.constant 0 : index
    %1 = vector.load %arg1[%c0_1, %c0_2] : memref<32x400xbf16, #tpu.memory_space<vmem>>, vector<32x400xbf16>
    %cst = arith.constant dense<0.000000e+00> : vector<32x32xf32>
    %2 = tpu.matmul %1, %0, %cst {dimension_numbers = #tpu.dot_dimension_numbers<[1], [0], [0], [1], [0, 0, 1, 1], [], []>} : vector<32x400xbf16>, vector<400x32xbf16>, vector<32x32xf32> -> vector<32x32xf32>
    %c0_3 = arith.constant 0 : index
    %c0_4 = arith.constant 0 : index
    %3 = vector.load %arg2[%c0_3, %c0_4] : memref<32x400xbf16, #tpu.memory_space<vmem>>, vector<32x400xbf16>
    %cst_5 = arith.constant dense<0.000000e+00> : vector<32x32xf32>
    %4 = tpu.matmul %3, %0, %cst_5 {dimension_numbers = #tpu.dot_dimension_numbers<[1], [0], [0], [1], [0, 0, 1, 1], [], []>} : vector<32x400xbf16>, vector<400x32xbf16>, vector<32x32xf32> -> vector<32x32xf32>
    %c0_6 = arith.constant 0 : index
    %c0_7 = arith.constant 0 : index
    %5 = vector.load %arg3[%c0_6, %c0_7] : memref<32x400xbf16, #tpu.memory_space<vmem>>, vector<32x400xbf16>
    %cst_8 = arith.constant dense<0.000000e+00> : vector<32x32xf32>
    %6 = tpu.matmul %5, %0, %cst_8 {dimension_numbers = #tpu.dot_dimension_numbers<[1], [0], [0], [1], [0, 0, 1, 1], [], []>} : vector<32x400xbf16>, vector<400x32xbf16>, vector<32x32xf32> -> vector<32x32xf32>
    %c0_9 = arith.constant 0 : index
    %c0_10 = arith.constant 0 : index
    %7 = vector.load %arg4[%c0_9, %c0_10] : memref<32x400xbf16, #tpu.memory_space<vmem>>, vector<32x400xbf16>
    %cst_11 = arith.constant dense<0.000000e+00> : vector<32x32xf32>
    %8 = tpu.matmul %7, %0, %cst_11 {dimension_numbers = #tpu.dot_dimension_numbers<[1], [0], [0], [1], [0, 0, 1, 1], [], []>} : vector<32x400xbf16>, vector<400x32xbf16>, vector<32x32xf32> -> vector<32x32xf32>
    %9 = arith.maximumf %2, %4 : vector<32x32xf32>
    %10 = arith.maximumf %6, %8 : vector<32x32xf32>
    %11 = arith.maximumf %9, %10 : vector<32x32xf32>
    %c0_12 = arith.constant 0 : index
    %c0_13 = arith.constant 0 : index
    %12 = vector.load %arg6[%c0_12, %c0_13] : memref<1x32xf32, #tpu.memory_space<vmem>>, vector<1x32xf32>
    %13 = vector.broadcast %12 : vector<1x32xf32> to vector<32x32xf32>
    %14 = arith.addf %11, %13 : vector<32x32xf32>
    %cst_14 = arith.constant 0.000000e+00 : f32
    %15 = vector.broadcast %cst_14 : f32 to vector<32x32xf32>
    %16 = arith.maximumf %14, %15 : vector<32x32xf32>
    %c0_15 = arith.constant 0 : index
    %c0_16 = arith.constant 0 : index
    %17 = vector.load %arg7[%c0_15, %c0_16] : memref<32x32xf32, #tpu.memory_space<vmem>>, vector<32x32xf32>
    tpu.vector_store %arg7[%c0_15, %c0_16], %16 {strides = array<i32>} : memref<32x32xf32, #tpu.memory_space<vmem>>, vector<32x32xf32>,
    return
  }
  func.func @transform_0(%arg0: i32) -> (i32, i32) {
    %c0_i32 = arith.constant 0 : i32
    %c0_i32_0 = arith.constant 0 : i32
    return %arg0, %c0_i32 : i32, i32
  }
  func.func @transform_1(%arg0: i32) -> (i32, i32) {
    %c0_i32 = arith.constant 0 : i32
    %c0_i32_0 = arith.constant 0 : i32
    return %arg0, %c0_i32 : i32, i32
  }
  func.func @transform_2(%arg0: i32) -> (i32, i32) {
    %c0_i32 = arith.constant 0 : i32
    %c0_i32_0 = arith.constant 0 : i32
    return %arg0, %c0_i32 : i32, i32
  }
  func.func @transform_3(%arg0: i32) -> (i32, i32) {
    %c0_i32 = arith.constant 0 : i32
    %c0_i32_0 = arith.constant 0 : i32
    return %arg0, %c0_i32 : i32, i32
  }
  func.func @transform_4(%arg0: i32) -> (i32, i32) {
    %c0_i32 = arith.constant 0 : i32
    %c0_i32_0 = arith.constant 0 : i32
    %c0_i32_1 = arith.constant 0 : i32
    return %c0_i32, %c0_i32_0 : i32, i32
  }
  func.func @transform_5(%arg0: i32) -> (i32, i32) {
    %c0_i32 = arith.constant 0 : i32
    %c0_i32_0 = arith.constant 0 : i32
    %c0_i32_1 = arith.constant 0 : i32
    return %c0_i32, %c0_i32_0 : i32, i32
  }
  func.func @transform_6(%arg0: i32) -> (i32, i32) {
    %c0_i32 = arith.constant 0 : i32
    %c0_i32_0 = arith.constant 0 : i32
    return %arg0, %c0_i32 : i32, i32
  }
}

module attributes {stable_mosaic.version = 11 : i64} {
  func.func @head_kernel(%arg0: i32, %arg1: memref<8x512xbf16, #tpu.memory_space<vmem>>, %arg2: memref<512x120xbf16, #tpu.memory_space<vmem>>, %arg3: memref<1x120xf32, #tpu.memory_space<vmem>>, %arg4: memref<120x10xbf16, #tpu.memory_space<vmem>>, %arg5: memref<1x10xf32, #tpu.memory_space<vmem>>, %arg6: memref<8x10xf32, #tpu.memory_space<vmem>>) attributes {dimension_semantics = [#tpu.dimension_semantics<parallel>], iteration_bounds = array<i64: 1>, scalar_prefetch = 0 : i64, scratch_operands = 0 : i64, tpu.core_type = #tpu.core_type<tc>, window_params = [{transform_indices = @transform_0, window_bounds = array<i64: 8, 512>}, {pipeline_mode = #tpu.pipeline_mode<synchronous>, transform_indices = @transform_1, window_bounds = array<i64: 512, 120>}, {pipeline_mode = #tpu.pipeline_mode<synchronous>, transform_indices = @transform_2, window_bounds = array<i64: 1, 120>}, {pipeline_mode = #tpu.pipeline_mode<synchronous>, transform_indices = @transform_3, window_bounds = array<i64: 120, 10>}, {pipeline_mode = #tpu.pipeline_mode<synchronous>, transform_indices = @transform_4, window_bounds = array<i64: 1, 10>}, {transform_indices = @transform_5, window_bounds = array<i64: 8, 10>}]} {
    %c0 = arith.constant 0 : index
    %c0_0 = arith.constant 0 : index
    %0 = vector.load %arg1[%c0, %c0_0] : memref<8x512xbf16, #tpu.memory_space<vmem>>, vector<8x512xbf16>
    %c0_1 = arith.constant 0 : index
    %c0_2 = arith.constant 0 : index
    %1 = vector.load %arg2[%c0_1, %c0_2] : memref<512x120xbf16, #tpu.memory_space<vmem>>, vector<512x120xbf16>
    %cst = arith.constant dense<0.000000e+00> : vector<8x120xf32>
    %2 = tpu.matmul %0, %1, %cst {dimension_numbers = #tpu.dot_dimension_numbers<[1], [0], [0], [1], [0, 0, 1, 1], [], []>} : vector<8x512xbf16>, vector<512x120xbf16>, vector<8x120xf32> -> vector<8x120xf32>
    %c0_3 = arith.constant 0 : index
    %c0_4 = arith.constant 0 : index
    %3 = vector.load %arg3[%c0_3, %c0_4] : memref<1x120xf32, #tpu.memory_space<vmem>>, vector<1x120xf32>
    %4 = vector.broadcast %3 : vector<1x120xf32> to vector<8x120xf32>
    %5 = arith.addf %2, %4 : vector<8x120xf32>
    %cst_5 = arith.constant 0.000000e+00 : f32
    %6 = vector.broadcast %cst_5 : f32 to vector<8x120xf32>
    %7 = arith.maximumf %5, %6 : vector<8x120xf32>
    %8 = arith.truncf %7 : vector<8x120xf32> to vector<8x120xbf16>
    %c0_6 = arith.constant 0 : index
    %c0_7 = arith.constant 0 : index
    %9 = vector.load %arg4[%c0_6, %c0_7] : memref<120x10xbf16, #tpu.memory_space<vmem>>, vector<120x10xbf16>
    %cst_8 = arith.constant dense<0.000000e+00> : vector<8x10xf32>
    %10 = tpu.matmul %8, %9, %cst_8 {dimension_numbers = #tpu.dot_dimension_numbers<[1], [0], [0], [1], [0, 0, 1, 1], [], []>} : vector<8x120xbf16>, vector<120x10xbf16>, vector<8x10xf32> -> vector<8x10xf32>
    %c0_9 = arith.constant 0 : index
    %c0_10 = arith.constant 0 : index
    %11 = vector.load %arg5[%c0_9, %c0_10] : memref<1x10xf32, #tpu.memory_space<vmem>>, vector<1x10xf32>
    %12 = vector.broadcast %11 : vector<1x10xf32> to vector<8x10xf32>
    %13 = arith.addf %10, %12 : vector<8x10xf32>
    %cst_11 = arith.constant 0.000000e+00 : f32
    %14 = vector.broadcast %cst_11 : f32 to vector<8x10xf32>
    %15 = arith.maximumf %13, %14 : vector<8x10xf32>
    %cst_12 = arith.constant dense<0xFF800000> : vector<8xf32>
    %16 = vector.multi_reduction <maximumf>, %15, %cst_12 [1] : vector<8x10xf32> to vector<8xf32>
    %17 = vector.shape_cast %16 : vector<8xf32> to vector<8x1xf32>
    %18 = vector.broadcast %17 : vector<8x1xf32> to vector<8x10xf32>
    %19 = arith.subf %15, %18 : vector<8x10xf32>
    %20 = math.exp %19 : vector<8x10xf32>
    %cst_13 = arith.constant dense<0.000000e+00> : vector<8xf32>
    %21 = vector.multi_reduction <add>, %20, %cst_13 [1] : vector<8x10xf32> to vector<8xf32>
    %22 = vector.shape_cast %21 : vector<8xf32> to vector<8x1xf32>
    %23 = math.log %22 : vector<8x1xf32>
    %24 = arith.addf %23, %17 : vector<8x1xf32>
    %25 = vector.broadcast %24 : vector<8x1xf32> to vector<8x10xf32>
    %26 = arith.subf %15, %25 : vector<8x10xf32>
    %c0_14 = arith.constant 0 : index
    %c0_15 = arith.constant 0 : index
    %27 = vector.load %arg6[%c0_14, %c0_15] : memref<8x10xf32, #tpu.memory_space<vmem>>, vector<8x10xf32>
    tpu.vector_store %arg6[%c0_14, %c0_15], %26 {strides = array<i32>} : memref<8x10xf32, #tpu.memory_space<vmem>>, vector<8x10xf32>,
    return
  }
  func.func @transform_0(%arg0: i32) -> (i32, i32) {
    %c0_i32 = arith.constant 0 : i32
    %c0_i32_0 = arith.constant 0 : i32
    return %arg0, %c0_i32 : i32, i32
  }
  func.func @transform_1(%arg0: i32) -> (i32, i32) {
    %c0_i32 = arith.constant 0 : i32
    %c0_i32_0 = arith.constant 0 : i32
    %c0_i32_1 = arith.constant 0 : i32
    return %c0_i32, %c0_i32_0 : i32, i32
  }
  func.func @transform_2(%arg0: i32) -> (i32, i32) {
    %c0_i32 = arith.constant 0 : i32
    %c0_i32_0 = arith.constant 0 : i32
    %c0_i32_1 = arith.constant 0 : i32
    return %c0_i32, %c0_i32_0 : i32, i32
  }
  func.func @transform_3(%arg0: i32) -> (i32, i32) {
    %c0_i32 = arith.constant 0 : i32
    %c0_i32_0 = arith.constant 0 : i32
    %c0_i32_1 = arith.constant 0 : i32
    return %c0_i32, %c0_i32_0 : i32, i32
  }
  func.func @transform_4(%arg0: i32) -> (i32, i32) {
    %c0_i32 = arith.constant 0 : i32
    %c0_i32_0 = arith.constant 0 : i32
    %c0_i32_1 = arith.constant 0 : i32
    return %c0_i32, %c0_i32_0 : i32, i32
  }
  func.func @transform_5(%arg0: i32) -> (i32, i32) {
    %c0_i32 = arith.constant 0 : i32
    %c0_i32_0 = arith.constant 0 : i32
    return %arg0, %c0_i32 : i32, i32
  }
}

</mosaic_0001>

<llo_original>
// kernel: myconv_forward.3
$region0: #{myconv_forward.3}
  #allocation0 [shape = 'u32[]', space=smem, size = 0x4, offset = 0x4, fixed_abs, tag = 'smem constant byte address 0x4 - core index']
  #allocation1 [shape = 'u32[144,128]{1,0:T(1,128)}', space=vmem, size = 0x12000, scoped, tag = 'internal scratch']
  %s0 = inlined_call_operand.vmem [shape: bf16[288,25], index: 0, kind: input, shape index: {}]
  %s1 = inlined_call_operand.vmem [shape: bf16[288,25], index: 1, kind: input, shape index: {}]
  %s2 = inlined_call_operand.vmem [shape: bf16[288,25], index: 2, kind: input, shape index: {}]
  %s3 = inlined_call_operand.vmem [shape: bf16[288,25], index: 3, kind: input, shape index: {}]
  %s4 = inlined_call_operand.vmem [shape: bf16[25,16], index: 4, kind: input, shape index: {}]
  %s5 = inlined_call_operand.vmem [shape: f32[1,16], index: 5, kind: input, shape index: {}]
  %s6 = inlined_call_operand.vmem [shape: f32[288,16], index: 6, kind: output, shape index: {}]
  %s7 = sld [smem:[#allocation0]]
  $region34: #{myconv_forward.3} parent=0
    _
  %s9 = ssub.s32 1, %s7
  %s10 = scalar_select 0, %s9, %s7
  // Predicated region
  $region2: #{myconv_forward.3} parent=0 // pred_check
    _
  $region3: #{myconv_forward.3} parent=0 // pred_check_branch
    %12 = sbr.rel (0) target = $region5
  $region4: #{myconv_forward.3} parent=0 // pred_region
    _
  $region5: #{myconv_forward.3} parent=0 // pred_fallthru
    _
  // Predicated region
  $region6: #{myconv_forward.3} parent=0 // pred_check
    _
  $region7: #{myconv_forward.3} parent=0 // pred_check_branch
    %14 = sbr.rel (0) target = $region9
  $region8: #{myconv_forward.3} parent=0 // pred_region
    _
  $region9: #{myconv_forward.3} parent=0 // pred_fallthru
    _
  // Predicated region
  $region10: #{myconv_forward.3} parent=0 // pred_check
    _
  $region11: #{myconv_forward.3} parent=0 // pred_check_branch
    %16 = sbr.rel (0) target = $region13
  $region12: #{myconv_forward.3} parent=0 // pred_region
    _
  $region13: #{myconv_forward.3} parent=0 // pred_fallthru
    _
  // Predicated region
  $region14: #{myconv_forward.3} parent=0 // pred_check
    _
  $region15: #{myconv_forward.3} parent=0 // pred_check_branch
    %18 = sbr.rel (0) target = $region17
  $region16: #{myconv_forward.3} parent=0 // pred_region
    _
  $region17: #{myconv_forward.3} parent=0 // pred_fallthru
    _
  // Predicated region
  $region18: #{myconv_forward.3} parent=0 // pred_check
    _
  $region19: #{myconv_forward.3} parent=0 // pred_check_branch
    %20 = sbr.rel (0) target = $region21
  $region20: #{myconv_forward.3} parent=0 // pred_region
    _
  $region21: #{myconv_forward.3} parent=0 // pred_fallthru
    _
  // Predicated region
  $region22: #{myconv_forward.3} parent=0 // pred_check
    _
  $region23: #{myconv_forward.3} parent=0 // pred_check_branch
    %22 = sbr.rel (0) target = $region25
  $region24: #{myconv_forward.3} parent=0 // pred_region
    _
  $region25: #{myconv_forward.3} parent=0 // pred_fallthru
    _
  %v24 = vld [vmem:[%s4] sm:$0xf]
  %v25 = vld [vmem:[%s4 + $0x4] sm:$0xf]
  %v26 = vld [vmem:[%s4 + $0x8] sm:$0xf]
  %v27 = vld [vmem:[%s4 + $0xc] sm:$0x1]
  %v28 = vld [vmem:[%s0] sm:$0xf]
  %v29 = vld [vmem:[%s0 + $0x4] sm:$0xf]
  %v30 = vld [vmem:[%s0 + $0x8] sm:$0xf]
  %v31 = vld [vmem:[%s0 + $0xc] sm:$0xf]
  %v32 = vld [vmem:[%s0 + $0x10] sm:$0xf]
  %v33 = vld [vmem:[%s0 + $0x14] sm:$0xf]
  %v34 = vld [vmem:[%s0 + $0x18] sm:$0xf]
  %v35 = vld [vmem:[%s0 + $0x1c] sm:$0xf]
  %v36 = vld [vmem:[%s0 + $0x20] sm:$0xf]
  %v37 = vld [vmem:[%s0 + $0x24] sm:$0xf]
  %v38 = vld [vmem:[%s0 + $0x28] sm:$0xf]
  %v39 = vld [vmem:[%s0 + $0x2c] sm:$0xf]
  %v40 = vld [vmem:[%s0 + $0x30] sm:$0xf]
  %v41 = vld [vmem:[%s0 + $0x34] sm:$0xf]
  %v42 = vld [vmem:[%s0 + $0x38] sm:$0xf]
  %v43 = vld [vmem:[%s0 + $0x3c] sm:$0xf]
  %v44 = vld [vmem:[%s0 + $0x40] sm:$0xf]
  %v45 = vld [vmem:[%s0 + $0x44] sm:$0xf]
  %v46 = vld [vmem:[%s0 + $0x48] sm:$0xf]
  %v47 = vld [vmem:[%s0 + $0x4c] sm:$0xf]
  %v48 = vld [vmem:[%s0 + $0x50] sm:$0xf]
  %v49 = vld [vmem:[%s0 + $0x54] sm:$0xf]
  %v50 = vld [vmem:[%s0 + $0x58] sm:$0xf]
  %v51 = vld [vmem:[%s0 + $0x5c] sm:$0xf]
  %v52 = vld [vmem:[%s0 + $0x60] sm:$0xf]
  %v53 = vld [vmem:[%s0 + $0x64] sm:$0xf]
  %v54 = vld [vmem:[%s0 + $0x68] sm:$0xf]
  %v55 = vld [vmem:[%s0 + $0x6c] sm:$0xf]
  %v56 = vld [vmem:[%s0 + $0x70] sm:$0xf]
  %v57 = vld [vmem:[%s0 + $0x74] sm:$0xf]
  %v58 = vld [vmem:[%s0 + $0x78] sm:$0xf]
  %v59 = vld [vmem:[%s0 + $0x7c] sm:$0xf]
  %v60 = vld [vmem:[%s0 + $0x80] sm:$0xf]
  %v61 = vld [vmem:[%s0 + $0x84] sm:$0xf]
  %v62 = vld [vmem:[%s0 + $0x88] sm:$0xf]
  %v63 = vld [vmem:[%s0 + $0x8c] sm:$0xf]
  %v100 = vunpack.c.l.b16 %v28
  %v101 = vunpack.c.l.b16 %v29
  %v102 = vunpack.c.l.b16 %v30
  %v103 = vunpack.c.l.b16 %v31
  %v104 = vunpack.c.l.b16 %v32
  %v105 = vunpack.c.l.b16 %v33
  %v106 = vunpack.c.l.b16 %v34
  %v107 = vunpack.c.l.b16 %v35
  %v108 = vunpack.c.l.b16 %v36
  %v109 = vunpack.c.l.b16 %v37
  %v110 = vunpack.c.l.b16 %v38
  %v111 = vunpack.c.l.b16 %v39
  %v112 = vunpack.c.l.b16 %v40
  %v113 = vunpack.c.l.b16 %v41
  %v114 = vunpack.c.l.b16 %v42
  %v115 = vunpack.c.l.b16 %v43
  %v116 = vunpack.c.l.b16 %v44
  %v117 = vunpack.c.l.b16 %v45
  %v118 = vunpack.c.l.b16 %v46
  %v119 = vunpack.c.l.b16 %v47
  %v120 = vunpack.c.l.b16 %v48
  %v121 = vunpack.c.l.b16 %v49
  %v122 = vunpack.c.l.b16 %v50
  %v123 = vunpack.c.l.b16 %v51
  %v124 = vunpack.c.l.b16 %v52
  %v125 = vunpack.c.l.b16 %v53
  %v126 = vunpack.c.l.b16 %v54
  %v127 = vunpack.c.l.b16 %v55
  %v128 = vunpack.c.l.b16 %v56
  %v129 = vunpack.c.l.b16 %v57
  %v130 = vunpack.c.l.b16 %v58
  %v131 = vunpack.c.l.b16 %v59
  %v132 = vunpack.c.l.b16 %v60
  %v133 = vunpack.c.l.b16 %v61
  %v134 = vunpack.c.l.b16 %v62
  %v135 = vunpack.c.l.b16 %v63
  %v136 = vpack.c.b16 %v101, %v100
  %v137 = vpack.c.b16 %v103, %v102
  %v138 = vpack.c.b16 %v105, %v104
  %v139 = vpack.c.b16 %v107, %v106
  %v140 = vpack.c.b16 %v109, %v108
  %v141 = vpack.c.b16 %v111, %v110
  %v142 = vpack.c.b16 %v113, %v112
  %v143 = vpack.c.b16 %v115, %v114
  %v144 = vpack.c.b16 %v117, %v116
  %v145 = vpack.c.b16 %v119, %v118
  %v146 = vpack.c.b16 %v121, %v120
  %v147 = vpack.c.b16 %v123, %v122
  %v148 = vpack.c.b16 %v125, %v124
  %v149 = vpack.c.b16 %v127, %v126
  %v150 = vpack.c.b16 %v129, %v128
  %v151 = vpack.c.b16 %v131, %v130
  %v152 = vpack.c.b16 %v133, %v132
  %v153 = vpack.c.b16 %v135, %v134
  %v158 = vunpack.c.l.b16 %v24
  %v159 = vunpack.c.l.b16 %v25
  %v160 = vunpack.c.l.b16 %v26
  %v161 = vunpack.c.l.b16 %v27
  %v162 = vpack.c.b16 %v159, %v158
  %v163 = vpack.c.b16 %v161, %v160
  %vm165 = vcmask 203776
  %v167 = vsel %vm165, %v136, 0
  %v170 = vsel %vm165, %v137, 0
  %v173 = vsel %vm165, %v138, 0
  %v176 = vsel %vm165, %v139, 0
  %v179 = vsel %vm165, %v140, 0
  %v182 = vsel %vm165, %v141, 0
  %v185 = vsel %vm165, %v142, 0
  %v188 = vsel %vm165, %v143, 0
  %v191 = vsel %vm165, %v144, 0
  %v194 = vsel %vm165, %v145, 0
  %v197 = vsel %vm165, %v146, 0
  %v200 = vsel %vm165, %v147, 0
  %v203 = vsel %vm165, %v148, 0
  %v206 = vsel %vm165, %v149, 0
  %v209 = vsel %vm165, %v150, 0
  %v212 = vsel %vm165, %v151, 0
  %v215 = vsel %vm165, %v152, 0
  %v218 = vsel %vm165, %v153, 0
  %vm220 = vcmask 1043456
  %vm221 = vcmask 1044480
  %v222 = vsel %vm220, 4294967295, 65535
  %v223 = vsel %vm221, %v222, 0
  %v225 = vand.u32 %v163, %v223
  %227 = vmatprep.subr.bf16.mxu0 0
  %228 = vmatpush1.bf16.msra.mxu0 %v162
  %229 = vmatprep.subr.bf16.mxu0 0
  %230 = vmatpush1.bf16.msra.mxu0 %v225
  %231 = vmatprep.subr.bf16.mxu0 0
  %232 = vmatpush1.bf16.msra.mxu0 0
  %233 = vmatprep.subr.bf16.mxu0 0
  %234 = vmatpush1.bf16.msra.mxu0 0
  %235 = vmatprep.subr.bf16.mxu0 0
  %236 = vmatpush1.bf16.msra.mxu0 0
  %237 = vmatprep.subr.bf16.mxu0 0
  %238 = vmatpush1.bf16.msra.mxu0 0
  %239 = vmatprep.subr.bf16.mxu0 0
  %240 = vmatpush1.bf16.msra.mxu0 0
  %241 = vmatprep.subr.bf16.mxu0 0
  %242 = vmatpush1.bf16.msra.mxu0 0
  %243 = vmatprep.subr.bf16.mxu0 0
  %244 = vmatpush1.bf16.msra.mxu0 0
  %245 = vmatprep.subr.bf16.mxu0 0
  %246 = vmatpush1.bf16.msra.mxu0 0
  %247 = vmatprep.subr.bf16.mxu0 0
  %248 = vmatpush1.bf16.msra.mxu0 0
  %249 = vmatprep.subr.bf16.mxu0 0
  %250 = vmatpush1.bf16.msra.mxu0 0
  %251 = vmatprep.subr.bf16.mxu0 0
  %252 = vmatpush1.bf16.msra.mxu0 0
  %253 = vmatprep.subr.bf16.mxu0 0
  %254 = vmatpush1.bf16.msra.mxu0 0
  %255 = vmatprep.subr.bf16.mxu0 0
  %256 = vmatpush1.bf16.msra.mxu0 0
  %257 = vmatprep.subr.bf16.mxu0 0
  %258 = vmatpush1.bf16.msra.mxu0 0
  %259 = vmatprep.mubr.bf16.mxu0 0
  %260 = vmatmul.mubr.bf16.gmra.mrb[0].mxu0 %v167
  %v261 = vpop.f32.mrb[0].mxu0
  %v262 = vadd.f32 0.0, %v261
  %v263 = vpop.f32.mrb[0].mxu0
  %v264 = vpop.f32.mrb[0].mxu0
  %v265 = vadd.f32 0.0, %v264
  %v266 = vpop.f32.mrb[0].mxu0
  %267 = vmatprep.mubr.bf16.mxu0 0
  %268 = vmatmul.mubr.bf16.gmra.mrb[0].mxu0 %v170
  %v269 = vpop.f32.mrb[0].mxu0
  %v270 = vadd.f32 0.0, %v269
  %v271 = vpop.f32.mrb[0].mxu0
  %v272 = vpop.f32.mrb[0].mxu0
  %v273 = vadd.f32 0.0, %v272
  %v274 = vpop.f32.mrb[0].mxu0
  %275 = vmatprep.mubr.bf16.mxu0 0
  %276 = vmatmul.mubr.bf16.gmra.mrb[0].mxu0 %v173
  %v277 = vpop.f32.mrb[0].mxu0
  %v278 = vadd.f32 0.0, %v277
  %v279 = vpop.f32.mrb[0].mxu0
  %v280 = vpop.f32.mrb[0].mxu0
  %v281 = vadd.f32 0.0, %v280
  %v282 = vpop.f32.mrb[0].mxu0
  %283 = vmatprep.mubr.bf16.mxu0 0
  %284 = vmatmul.mubr.bf16.gmra.mrb[0].mxu0 %v176
  %v285 = vpop.f32.mrb[0].mxu0
  %v286 = vadd.f32 0.0, %v285
  %v287 = vpop.f32.mrb[0].mxu0
  %v288 = vpop.f32.mrb[0].mxu0
  %v289 = vadd.f32 0.0, %v288
  %v290 = vpop.f32.mrb[0].mxu0
  %291 = vmatprep.mubr.bf16.mxu0 0
  %292 = vmatmul.mubr.bf16.gmra.mrb[0].mxu0 %v179
  %v293 = vpop.f32.mrb[0].mxu0
  %v294 = vadd.f32 0.0, %v293
  %v295 = vpop.f32.mrb[0].mxu0
  %v296 = vpop.f32.mrb[0].mxu0
  %v297 = vadd.f32 0.0, %v296
  %v298 = vpop.f32.mrb[0].mxu0
  %299 = vmatprep.mubr.bf16.mxu0 0
  %300 = vmatmul.mubr.bf16.gmra.mrb[0].mxu0 %v182
  %v301 = vpop.f32.mrb[0].mxu0
  %v302 = vadd.f32 0.0, %v301
  %v303 = vpop.f32.mrb[0].mxu0
  %v304 = vpop.f32.mrb[0].mxu0
  %v305 = vadd.f32 0.0, %v304
  %v306 = vpop.f32.mrb[0].mxu0
  %307 = vmatprep.mubr.bf16.mxu0 0
  %308 = vmatmul.mubr.bf16.gmra.mrb[0].mxu0 %v185
  %v309 = vpop.f32.mrb[0].mxu0
  %v310 = vadd.f32 0.0, %v309
  %v311 = vpop.f32.mrb[0].mxu0
  %v312 = vpop.f32.mrb[0].mxu0
  %v313 = vadd.f32 0.0, %v312
  %v314 = vpop.f32.mrb[0].mxu0
  %315 = vmatprep.mubr.bf16.mxu0 0
  %316 = vmatmul.mubr.bf16.gmra.mrb[0].mxu0 %v188
  %v317 = vpop.f32.mrb[0].mxu0
  %v318 = vadd.f32 0.0, %v317
  %v319 = vpop.f32.mrb[0].mxu0
  %v320 = vpop.f32.mrb[0].mxu0
  %v321 = vadd.f32 0.0, %v320
  %v322 = vpop.f32.mrb[0].mxu0
  %323 = vmatprep.mubr.bf16.mxu0 0
  %324 = vmatmul.mubr.bf16.gmra.mrb[0].mxu0 %v191
  %v325 = vpop.f32.mrb[0].mxu0
  %v326 = vadd.f32 0.0, %v325
  %v327 = vpop.f32.mrb[0].mxu0
  %v328 = vpop.f32.mrb[0].mxu0
  %v329 = vadd.f32 0.0, %v328
  %v330 = vpop.f32.mrb[0].mxu0
  %331 = vmatprep.mubr.bf16.mxu0 0
  %332 = vmatmul.mubr.bf16.gmra.mrb[0].mxu0 %v194
  %v333 = vpop.f32.mrb[0].mxu0
  %v334 = vadd.f32 0.0, %v333
  %v335 = vpop.f32.mrb[0].mxu0
  %v336 = vpop.f32.mrb[0].mxu0
  %v337 = vadd.f32 0.0, %v336
  %v338 = vpop.f32.mrb[0].mxu0
  %339 = vmatprep.mubr.bf16.mxu0 0
  %340 = vmatmul.mubr.bf16.gmra.mrb[0].mxu0 %v197
  %v341 = vpop.f32.mrb[0].mxu0
  %v342 = vadd.f32 0.0, %v341
  %v343 = vpop.f32.mrb[0].mxu0
  %v344 = vpop.f32.mrb[0].mxu0
  %v345 = vadd.f32 0.0, %v344
  %v346 = vpop.f32.mrb[0].mxu0
  %347 = vmatprep.mubr.bf16.mxu0 0
  %348 = vmatmul.mubr.bf16.gmra.mrb[0].mxu0 %v200
  %v349 = vpop.f32.mrb[0].mxu0
  %v350 = vadd.f32 0.0, %v349
  %v351 = vpop.f32.mrb[0].mxu0
  %v352 = vpop.f32.mrb[0].mxu0
  %v353 = vadd.f32 0.0, %v352
  %v354 = vpop.f32.mrb[0].mxu0
  %355 = vmatprep.mubr.bf16.mxu0 0
  %356 = vmatmul.mubr.bf16.gmra.mrb[0].mxu0 %v203
  %v357 = vpop.f32.mrb[0].mxu0
  %v358 = vadd.f32 0.0, %v357
  %v359 = vpop.f32.mrb[0].mxu0
  %v360 = vpop.f32.mrb[0].mxu0
  %v361 = vadd.f32 0.0, %v360
  %v362 = vpop.f32.mrb[0].mxu0
  %363 = vmatprep.mubr.bf16.mxu0 0
  %364 = vmatmul.mubr.bf16.gmra.mrb[0].mxu0 %v206
  %v365 = vpop.f32.mrb[0].mxu0
  %v366 = vadd.f32 0.0, %v365
  %v367 = vpop.f32.mrb[0].mxu0
  %v368 = vpop.f32.mrb[0].mxu0
  %v369 = vadd.f32 0.0, %v368
  %v370 = vpop.f32.mrb[0].mxu0
  %371 = vmatprep.mubr.bf16.mxu0 0
  %372 = vmatmul.mubr.bf16.gmra.mrb[0].mxu0 %v209
  %v373 = vpop.f32.mrb[0].mxu0
  %v374 = vadd.f32 0.0, %v373
  %v375 = vpop.f32.mrb[0].mxu0
  %v376 = vpop.f32.mrb[0].mxu0
  %v377 = vadd.f32 0.0, %v376
  %v378 = vpop.f32.mrb[0].mxu0
  %379 = vmatprep.mubr.bf16.mxu0 0
  %380 = vmatmul.mubr.bf16.gmra.mrb[0].mxu0 %v212
  %v381 = vpop.f32.mrb[0].mxu0
  %v382 = vadd.f32 0.0, %v381
  %v383 = vpop.f32.mrb[0].mxu0
  %v384 = vpop.f32.mrb[0].mxu0
  %v385 = vadd.f32 0.0, %v384
  %v386 = vpop.f32.mrb[0].mxu0
  %387 = vmatprep.mubr.bf16.mxu0 0
  %388 = vmatmul.mubr.bf16.gmra.mrb[0].mxu0 %v215
  %v389 = vpop.f32.mrb[0].mxu0
  %v390 = vadd.f32 0.0, %v389
  %v391 = vpop.f32.mrb[0].mxu0
  %v392 = vpop.f32.mrb[0].mxu0
  %v393 = vadd.f32 0.0, %v392
  %v394 = vpop.f32.mrb[0].mxu0
  %395 = vmatprep.mubr.bf16.mxu0 0
  %396 = vmatmul.mubr.bf16.gmra.mrb[0].mxu0 %v218
  %v397 = vpop.f32.mrb[0].mxu0
  %v398 = vadd.f32 0.0, %v397
  %v399 = vpop.f32.mrb[0].mxu0
  %v400 = vpop.f32.mrb[0].mxu0
  %v401 = vadd.f32 0.0, %v400
  %v402 = vpop.f32.mrb[0].mxu0
  %403 = vdwg.mxu0
  %v404 = vld [vmem:[%s1] sm:$0xf]
  %v405 = vld [vmem:[%s1 + $0x4] sm:$0xf]
  %v406 = vld [vmem:[%s1 + $0x8] sm:$0xf]
  %v407 = vld [vmem:[%s1 + $0xc] sm:$0xf]
  %v408 = vld [vmem:[%s1 + $0x10] sm:$0xf]
  %v409 = vld [vmem:[%s1 + $0x14] sm:$0xf]
  %v410 = vld [vmem:[%s1 + $0x18] sm:$0xf]
  %v411 = vld [vmem:[%s1 + $0x1c] sm:$0xf]
  %v412 = vld [vmem:[%s1 + $0x20] sm:$0xf]
  %v413 = vld [vmem:[%s1 + $0x24] sm:$0xf]
  %v414 = vld [vmem:[%s1 + $0x28] sm:$0xf]
  %v415 = vld [vmem:[%s1 + $0x2c] sm:$0xf]
  %v416 = vld [vmem:[%s1 + $0x30] sm:$0xf]
  %v417 = vld [vmem:[%s1 + $0x34] sm:$0xf]
  %v418 = vld [vmem:[%s1 + $0x38] sm:$0xf]
  %v419 = vld [vmem:[%s1 + $0x3c] sm:$0xf]
  %v420 = vld [vmem:[%s1 + $0x40] sm:$0xf]
  %v421 = vld [vmem:[%s1 + $0x44] sm:$0xf]
  %v422 = vld [vmem:[%s1 + $0x48] sm:$0xf]
  %v423 = vld [vmem:[%s1 + $0x4c] sm:$0xf]
  %v424 = vld [vmem:[%s1 + $0x50] sm:$0xf]
  %v425 = vld [vmem:[%s1 + $0x54] sm:$0xf]
  %v426 = vld [vmem:[%s1 + $0x58] sm:$0xf]
  %v427 = vld [vmem:[%s1 + $0x5c] sm:$0xf]
  %v428 = vld [vmem:[%s1 + $0x60] sm:$0xf]
  %v429 = vld [vmem:[%s1 + $0x64] sm:$0xf]
  %v430 = vld [vmem:[%s1 + $0x68] sm:$0xf]
  %v431 = vld [vmem:[%s1 + $0x6c] sm:$0xf]
  %v432 = vld [vmem:[%s1 + $0x70] sm:$0xf]
  %v433 = vld [vmem:[%s1 + $0x74] sm:$0xf]
  %v434 = vld [vmem:[%s1 + $0x78] sm:$0xf]
  %v435 = vld [vmem:[%s1 + $0x7c] sm:$0xf]
  %v436 = vld [vmem:[%s1 + $0x80] sm:$0xf]
  %v437 = vld [vmem:[%s1 + $0x84] sm:$0xf]
  %v438 = vld [vmem:[%s1 + $0x88] sm:$0xf]
  %v439 = vld [vmem:[%s1 + $0x8c] sm:$0xf]
  %v476 = vunpack.c.l.b16 %v404
  %v477 = vunpack.c.l.b16 %v405
  %v478 = vunpack.c.l.b16 %v406
  %v479 = vunpack.c.l.b16 %v407
  %v480 = vunpack.c.l.b16 %v408
  %v481 = vunpack.c.l.b16 %v409
  %v482 = vunpack.c.l.b16 %v410
  %v483 = vunpack.c.l.b16 %v411
  %v484 = vunpack.c.l.b16 %v412
  %v485 = vunpack.c.l.b16 %v413
  %v486 = vunpack.c.l.b16 %v414
  %v487 = vunpack.c.l.b16 %v415
  %v488 = vunpack.c.l.b16 %v416
  %v489 = vunpack.c.l.b16 %v417
  %v490 = vunpack.c.l.b16 %v418
  %v491 = vunpack.c.l.b16 %v419
  %v492 = vunpack.c.l.b16 %v420
  %v493 = vunpack.c.l.b16 %v421
  %v494 = vunpack.c.l.b16 %v422
  %v495 = vunpack.c.l.b16 %v423
  %v496 = vunpack.c.l.b16 %v424
  %v497 = vunpack.c.l.b16 %v425
  %v498 = vunpack.c.l.b16 %v426
  %v499 = vunpack.c.l.b16 %v427
  %v500 = vunpack.c.l.b16 %v428
  %v501 = vunpack.c.l.b16 %v429
  %v502 = vunpack.c.l.b16 %v430
  %v503 = vunpack.c.l.b16 %v431
  %v504 = vunpack.c.l.b16 %v432
  %v505 = vunpack.c.l.b16 %v433
  %v506 = vunpack.c.l.b16 %v434
  %v507 = vunpack.c.l.b16 %v435
  %v508 = vunpack.c.l.b16 %v436
  %v509 = vunpack.c.l.b16 %v437
  %v510 = vunpack.c.l.b16 %v438
  %v511 = vunpack.c.l.b16 %v439
  %v512 = vpack.c.b16 %v477, %v476
  %v513 = vpack.c.b16 %v479, %v478
  %v514 = vpack.c.b16 %v481, %v480
  %v515 = vpack.c.b16 %v483, %v482
  %v516 = vpack.c.b16 %v485, %v484
  %v517 = vpack.c.b16 %v487, %v486
  %v518 = vpack.c.b16 %v489, %v488
  %v519 = vpack.c.b16 %v491, %v490
  %v520 = vpack.c.b16 %v493, %v492
  %v521 = vpack.c.b16 %v495, %v494
  %v522 = vpack.c.b16 %v497, %v496
  %v523 = vpack.c.b16 %v499, %v498
  %v524 = vpack.c.b16 %v501, %v500
  %v525 = vpack.c.b16 %v503, %v502
  %v526 = vpack.c.b16 %v505, %v504
  %v527 = vpack.c.b16 %v507, %v506
  %v528 = vpack.c.b16 %v509, %v508
  %v529 = vpack.c.b16 %v511, %v510
  %v531 = vsel %vm165, %v512, 0
  %v534 = vsel %vm165, %v513, 0
  %v537 = vsel %vm165, %v514, 0
  %v540 = vsel %vm165, %v515, 0
  %v543 = vsel %vm165, %v516, 0
  %v546 = vsel %vm165, %v517, 0
  %v549 = vsel %vm165, %v518, 0
  %v552 = vsel %vm165, %v519, 0
  %v555 = vsel %vm165, %v520, 0
  %v558 = vsel %vm165, %v521, 0
  %v561 = vsel %vm165, %v522, 0
  %v564 = vsel %vm165, %v523, 0
  %v567 = vsel %vm165, %v524, 0
  %v570 = vsel %vm165, %v525, 0
  %v573 = vsel %vm165, %v526, 0
  %v576 = vsel %vm165, %v527, 0
  %v579 = vsel %vm165, %v528, 0
  %v582 = vsel %vm165, %v529, 0
  %584 = vmatprep.subr.bf16.mxu0 0
  %585 = vmatpush1.bf16.msra.mxu0 %v162
  %586 = vmatprep.subr.bf16.mxu0 0
  %587 = vmatpush1.bf16.msra.mxu0 %v225
  %588 = vmatprep.subr.bf16.mxu0 0
  %589 = vmatpush1.bf16.msra.mxu0 0
  %590 = vmatprep.subr.bf16.mxu0 0
  %591 = vmatpush1.bf16.msra.mxu0 0
  %592 = vmatprep.subr.bf16.mxu0 0
  %593 = vmatpush1.bf16.msra.mxu0 0
  %594 = vmatprep.subr.bf16.mxu0 0
  %595 = vmatpush1.bf16.msra.mxu0 0
  %596 = vmatprep.subr.bf16.mxu0 0
  %597 = vmatpush1.bf16.msra.mxu0 0
  %598 = vmatprep.subr.bf16.mxu0 0
  %599 = vmatpush1.bf16.msra.mxu0 0
  %600 = vmatprep.subr.bf16.mxu0 0
  %601 = vmatpush1.bf16.msra.mxu0 0
  %602 = vmatprep.subr.bf16.mxu0 0
  %603 = vmatpush1.bf16.msra.mxu0 0
  %604 = vmatprep.subr.bf16.mxu0 0
  %605 = vmatpush1.bf16.msra.mxu0 0
  %606 = vmatprep.subr.bf16.mxu0 0
  %607 = vmatpush1.bf16.msra.mxu0 0
  %608 = vmatprep.subr.bf16.mxu0 0
  %609 = vmatpush1.bf16.msra.mxu0 0
  %610 = vmatprep.subr.bf16.mxu0 0
  %611 = vmatpush1.bf16.msra.mxu0 0
  %612 = vmatprep.subr.bf16.mxu0 0
  %613 = vmatpush1.bf16.msra.mxu0 0
  %614 = vmatprep.subr.bf16.mxu0 0
  %615 = vmatpush1.bf16.msra.mxu0 0
  %616 = vmatprep.mubr.bf16.mxu0 0
  %617 = vmatmul.mubr.bf16.gmra.mrb[0].mxu0 %v531
  %v618 = vpop.f32.mrb[0].mxu0
  %v619 = vadd.f32 0.0, %v618
  %v620 = vpop.f32.mrb[0].mxu0
  %v621 = vpop.f32.mrb[0].mxu0
  %v622 = vadd.f32 0.0, %v621
  %v623 = vpop.f32.mrb[0].mxu0
  %624 = vmatprep.mubr.bf16.mxu0 0
  %625 = vmatmul.mubr.bf16.gmra.mrb[0].mxu0 %v534
  %v626 = vpop.f32.mrb[0].mxu0
  %v627 = vadd.f32 0.0, %v626
  %v628 = vpop.f32.mrb[0].mxu0
  %v629 = vpop.f32.mrb[0].mxu0
  %v630 = vadd.f32 0.0, %v629
  %v631 = vpop.f32.mrb[0].mxu0
  %632 = vmatprep.mubr.bf16.mxu0 0
  %633 = vmatmul.mubr.bf16.gmra.mrb[0].mxu0 %v537
  %v634 = vpop.f32.mrb[0].mxu0
  %v635 = vadd.f32 0.0, %v634
  %v636 = vpop.f32.mrb[0].mxu0
  %v637 = vpop.f32.mrb[0].mxu0
  %v638 = vadd.f32 0.0, %v637
  %v639 = vpop.f32.mrb[0].mxu0
  %640 = vmatprep.mubr.bf16.mxu0 0
  %641 = vmatmul.mubr.bf16.gmra.mrb[0].mxu0 %v540
  %v642 = vpop.f32.mrb[0].mxu0
  %v643 = vadd.f32 0.0, %v642
  %v644 = vpop.f32.mrb[0].mxu0
  %v645 = vpop.f32.mrb[0].mxu0
  %v646 = vadd.f32 0.0, %v645
  %v647 = vpop.f32.mrb[0].mxu0
  %648 = vmatprep.mubr.bf16.mxu0 0
  %649 = vmatmul.mubr.bf16.gmra.mrb[0].mxu0 %v543
  %v650 = vpop.f32.mrb[0].mxu0
  %v651 = vadd.f32 0.0, %v650
  %v652 = vpop.f32.mrb[0].mxu0
  %v653 = vpop.f32.mrb[0].mxu0
  %v654 = vadd.f32 0.0, %v653
  %v655 = vpop.f32.mrb[0].mxu0
  %656 = vmatprep.mubr.bf16.mxu0 0
  %657 = vmatmul.mubr.bf16.gmra.mrb[0].mxu0 %v546
  %v658 = vpop.f32.mrb[0].mxu0
  %v659 = vadd.f32 0.0, %v658
  %v660 = vpop.f32.mrb[0].mxu0
  %v661 = vpop.f32.mrb[0].mxu0
  %v662 = vadd.f32 0.0, %v661
  %v663 = vpop.f32.mrb[0].mxu0
  %664 = vmatprep.mubr.bf16.mxu0 0
  %665 = vmatmul.mubr.bf16.gmra.mrb[0].mxu0 %v549
  %v666 = vpop.f32.mrb[0].mxu0
  %v667 = vadd.f32 0.0, %v666
  %v668 = vpop.f32.mrb[0].mxu0
  %v669 = vpop.f32.mrb[0].mxu0
  %v670 = vadd.f32 0.0, %v669
  %v671 = vpop.f32.mrb[0].mxu0
  %672 = vmatprep.mubr.bf16.mxu0 0
  %673 = vmatmul.mubr.bf16.gmra.mrb[0].mxu0 %v552
  %v674 = vpop.f32.mrb[0].mxu0
  %v675 = vadd.f32 0.0, %v674
  %v676 = vpop.f32.mrb[0].mxu0
  %v677 = vpop.f32.mrb[0].mxu0
  %v678 = vadd.f32 0.0, %v677
  %v679 = vpop.f32.mrb[0].mxu0
  %680 = vmatprep.mubr.bf16.mxu0 0
  %681 = vmatmul.mubr.bf16.gmra.mrb[0].mxu0 %v555
  %v682 = vpop.f32.mrb[0].mxu0
  %v683 = vadd.f32 0.0, %v682
  %v684 = vpop.f32.mrb[0].mxu0
  %v685 = vpop.f32.mrb[0].mxu0
  %v686 = vadd.f32 0.0, %v685
  %v687 = vpop.f32.mrb[0].mxu0
  %688 = vmatprep.mubr.bf16.mxu0 0
  %689 = vmatmul.mubr.bf16.gmra.mrb[0].mxu0 %v558
  %v690 = vpop.f32.mrb[0].mxu0
  %v691 = vadd.f32 0.0, %v690
  %v692 = vpop.f32.mrb[0].mxu0
  %v693 = vpop.f32.mrb[0].mxu0
  %v694 = vadd.f32 0.0, %v693
  %v695 = vpop.f32.mrb[0].mxu0
  %696 = vmatprep.mubr.bf16.mxu0 0
  %697 = vmatmul.mubr.bf16.gmra.mrb[0].mxu0 %v561
  %v698 = vpop.f32.mrb[0].mxu0
  %v699 = vadd.f32 0.0, %v698
  %v700 = vpop.f32.mrb[0].mxu0
  %v701 = vpop.f32.mrb[0].mxu0
  %v702 = vadd.f32 0.0, %v701
  %v703 = vpop.f32.mrb[0].mxu0
  %704 = vmatprep.mubr.bf16.mxu0 0
  %705 = vmatmul.mubr.bf16.gmra.mrb[0].mxu0 %v564
  %v706 = vpop.f32.mrb[0].mxu0
  %v707 = vadd.f32 0.0, %v706
  %v708 = vpop.f32.mrb[0].mxu0
  %v709 = vpop.f32.mrb[0].mxu0
  %v710 = vadd.f32 0.0, %v709
  %v711 = vpop.f32.mrb[0].mxu0
  %712 = vmatprep.mubr.bf16.mxu0 0
  %713 = vmatmul.mubr.bf16.gmra.mrb[0].mxu0 %v567
  %v714 = vpop.f32.mrb[0].mxu0
  %v715 = vadd.f32 0.0, %v714
  %v716 = vpop.f32.mrb[0].mxu0
  %v717 = vpop.f32.mrb[0].mxu0
  %v718 = vadd.f32 0.0, %v717
  %v719 = vpop.f32.mrb[0].mxu0
  %720 = vmatprep.mubr.bf16.mxu0 0
  %721 = vmatmul.mubr.bf16.gmra.mrb[0].mxu0 %v570
  %v722 = vpop.f32.mrb[0].mxu0
  %v723 = vadd.f32 0.0, %v722
  %v724 = vpop.f32.mrb[0].mxu0
  %v725 = vpop.f32.mrb[0].mxu0
  %v726 = vadd.f32 0.0, %v725
  %v727 = vpop.f32.mrb[0].mxu0
  %728 = vmatprep.mubr.bf16.mxu0 0
  %729 = vmatmul.mubr.bf16.gmra.mrb[0].mxu0 %v573
  %v730 = vpop.f32.mrb[0].mxu0
  %v731 = vadd.f32 0.0, %v730
  %v732 = vpop.f32.mrb[0].mxu0
  %v733 = vpop.f32.mrb[0].mxu0
  %v734 = vadd.f32 0.0, %v733
  %v735 = vpop.f32.mrb[0].mxu0
  %736 = vmatprep.mubr.bf16.mxu0 0
  %737 = vmatmul.mubr.bf16.gmra.mrb[0].mxu0 %v576
  %v738 = vpop.f32.mrb[0].mxu0
  %v739 = vadd.f32 0.0, %v738
  %v740 = vpop.f32.mrb[0].mxu0
  %v741 = vpop.f32.mrb[0].mxu0
  %v742 = vadd.f32 0.0, %v741
  %v743 = vpop.f32.mrb[0].mxu0
  %744 = vmatprep.mubr.bf16.mxu0 0
  %745 = vmatmul.mubr.bf16.gmra.mrb[0].mxu0 %v579
  %v746 = vpop.f32.mrb[0].mxu0
  %v747 = vadd.f32 0.0, %v746
  %v748 = vpop.f32.mrb[0].mxu0
  %v749 = vpop.f32.mrb[0].mxu0
  %v750 = vadd.f32 0.0, %v749
  %v751 = vpop.f32.mrb[0].mxu0
  %752 = vmatprep.mubr.bf16.mxu0 0
  %753 = vmatmul.mubr.bf16.gmra.mrb[0].mxu0 %v582
  %v754 = vpop.f32.mrb[0].mxu0
  %v755 = vadd.f32 0.0, %v754
  %v756 = vpop.f32.mrb[0].mxu0
  %v757 = vpop.f32.mrb[0].mxu0
  %v758 = vadd.f32 0.0, %v757
  %v759 = vpop.f32.mrb[0].mxu0
  %760 = vdwg.mxu0
  %v761 = vld [vmem:[%s2] sm:$0xf]
  %v762 = vld [vmem:[%s2 + $0x4] sm:$0xf]
  %v763 = vld [vmem:[%s2 + $0x8] sm:$0xf]
  %v764 = vld [vmem:[%s2 + $0xc] sm:$0xf]
  %v765 = vld [vmem:[%s2 + $0x10] sm:$0xf]
  %v766 = vld [vmem:[%s2 + $0x14] sm:$0xf]
  %v767 = vld [vmem:[%s2 + $0x18] sm:$0xf]
  %v768 = vld [vmem:[%s2 + $0x1c] sm:$0xf]
  %v769 = vld [vmem:[%s2 + $0x20] sm:$0xf]
  %v770 = vld [vmem:[%s2 + $0x24] sm:$0xf]
  %v771 = vld [vmem:[%s2 + $0x28] sm:$0xf]
  %v772 = vld [vmem:[%s2 + $0x2c] sm:$0xf]
  %v773 = vld [vmem:[%s2 + $0x30] sm:$0xf]
  %v774 = vld [vmem:[%s2 + $0x34] sm:$0xf]
  %v775 = vld [vmem:[%s2 + $0x38] sm:$0xf]
  %v776 = vld [vmem:[%s2 + $0x3c] sm:$0xf]
  %v777 = vld [vmem:[%s2 + $0x40] sm:$0xf]
  %v778 = vld [vmem:[%s2 + $0x44] sm:$0xf]
  %v779 = vld [vmem:[%s2 + $0x48] sm:$0xf]
  %v780 = vld [vmem:[%s2 + $0x4c] sm:$0xf]
  %v781 = vld [vmem:[%s2 + $0x50] sm:$0xf]
  %v782 = vld [vmem:[%s2 + $0x54] sm:$0xf]
  %v783 = vld [vmem:[%s2 + $0x58] sm:$0xf]
  %v784 = vld [vmem:[%s2 + $0x5c] sm:$0xf]
  %v785 = vld [vmem:[%s2 + $0x60] sm:$0xf]
  %v786 = vld [vmem:[%s2 + $0x64] sm:$0xf]
  %v787 = vld [vmem:[%s2 + $0x68] sm:$0xf]
  %v788 = vld [vmem:[%s2 + $0x6c] sm:$0xf]
  %v789 = vld [vmem:[%s2 + $0x70] sm:$0xf]
  %v790 = vld [vmem:[%s2 + $0x74] sm:$0xf]
  %v791 = vld [vmem:[%s2 + $0x78] sm:$0xf]
  %v792 = vld [vmem:[%s2 + $0x7c] sm:$0xf]
  %v793 = vld [vmem:[%s2 + $0x80] sm:$0xf]
  %v794 = vld [vmem:[%s2 + $0x84] sm:$0xf]
  %v795 = vld [vmem:[%s2 + $0x88] sm:$0xf]
  %v796 = vld [vmem:[%s2 + $0x8c] sm:$0xf]
  %v833 = vunpack.c.l.b16 %v761
  %v834 = vunpack.c.l.b16 %v762
  %v835 = vunpack.c.l.b16 %v763
  %v836 = vunpack.c.l.b16 %v764
  %v837 = vunpack.c.l.b16 %v765
  %v838 = vunpack.c.l.b16 %v766
  %v839 = vunpack.c.l.b16 %v767
  %v840 = vunpack.c.l.b16 %v768
  %v841 = vunpack.c.l.b16 %v769
  %v842 = vunpack.c.l.b16 %v770
  %v843 = vunpack.c.l.b16 %v771
  %v844 = vunpack.c.l.b16 %v772
  %v845 = vunpack.c.l.b16 %v773
  %v846 = vunpack.c.l.b16 %v774
  %v847 = vunpack.c.l.b16 %v775
  %v848 = vunpack.c.l.b16 %v776
  %v849 = vunpack.c.l.b16 %v777
  %v850 = vunpack.c.l.b16 %v778
  %v851 = vunpack.c.l.b16 %v779
  %v852 = vunpack.c.l.b16 %v780
  %v853 = vunpack.c.l.b16 %v781
  %v854 = vunpack.c.l.b16 %v782
  %v855 = vunpack.c.l.b16 %v783
  %v856 = vunpack.c.l.b16 %v784
  %v857 = vunpack.c.l.b16 %v785
  %v858 = vunpack.c.l.b16 %v786
  %v859 = vunpack.c.l.b16 %v787
  %v860 = vunpack.c.l.b16 %v788
  %v861 = vunpack.c.l.b16 %v789
  %v862 = vunpack.c.l.b16 %v790
  %v863 = vunpack.c.l.b16 %v791
  %v864 = vunpack.c.l.b16 %v792
  %v865 = vunpack.c.l.b16 %v793
  %v866 = vunpack.c.l.b16 %v794
  %v867 = vunpack.c.l.b16 %v795
  %v868 = vunpack.c.l.b16 %v796
  %v869 = vpack.c.b16 %v834, %v833
  %v870 = vpack.c.b16 %v836, %v835
  %v871 = vpack.c.b16 %v838, %v837
  %v872 = vpack.c.b16 %v840, %v839
  %v873 = vpack.c.b16 %v842, %v841
  %v874 = vpack.c.b16 %v844, %v843
  %v875 = vpack.c.b16 %v846, %v845
  %v876 = vpack.c.b16 %v848, %v847
  %v877 = vpack.c.b16 %v850, %v849
  %v878 = vpack.c.b16 %v852, %v851
  %v879 = vpack.c.b16 %v854, %v853
  %v880 = vpack.c.b16 %v856, %v855
  %v881 = vpack.c.b16 %v858, %v857
  %v882 = vpack.c.b16 %v860, %v859
  %v883 = vpack.c.b16 %v862, %v861
  %v884 = vpack.c.b16 %v864, %v863
  %v885 = vpack.c.b16 %v866, %v865
  %v886 = vpack.c.b16 %v868, %v867
  %v888 = vsel %vm165, %v869, 0
  %v891 = vsel %vm165, %v870, 0
  %v894 = vsel %vm165, %v871, 0
  %v897 = vsel %vm165, %v872, 0
  %v900 = vsel %vm165, %v873, 0
  %v903 = vsel %vm165, %v874, 0
  %v906 = vsel %vm165, %v875, 0
  %v909 = vsel %vm165, %v876, 0
  %v912 = vsel %vm165, %v877, 0
  %v915 = vsel %vm165, %v878, 0
  %v918 = vsel %vm165, %v879, 0
  %v921 = vsel %vm165, %v880, 0
  %v924 = vsel %vm165, %v881, 0
  %v927 = vsel %vm165, %v882, 0
  %v930 = vsel %vm165, %v883, 0
  %v933 = vsel %vm165, %v884, 0
  %v936 = vsel %vm165, %v885, 0
  %v939 = vsel %vm165, %v886, 0
  %941 = vmatprep.subr.bf16.mxu0 0
  %942 = vmatpush1.bf16.msra.mxu0 %v162
  %943 = vmatprep.subr.bf16.mxu0 0
  %944 = vmatpush1.bf16.msra.mxu0 %v225
  %945 = vmatprep.subr.bf16.mxu0 0
  %946 = vmatpush1.bf16.msra.mxu0 0
  %947 = vmatprep.subr.bf16.mxu0 0
  %948 = vmatpush1.bf16.msra.mxu0 0
  %949 = vmatprep.subr.bf16.mxu0 0
  %950 = vmatpush1.bf16.msra.mxu0 0
  %951 = vmatprep.subr.bf16.mxu0 0
  %952 = vmatpush1.bf16.msra.mxu0 0
  %953 = vmatprep.subr.bf16.mxu0 0
  %954 = vmatpush1.bf16.msra.mxu0 0
  %955 = vmatprep.subr.bf16.mxu0 0
  %956 = vmatpush1.bf16.msra.mxu0 0
  %957 = vmatprep.subr.bf16.mxu0 0
  %958 = vmatpush1.bf16.msra.mxu0 0
  %959 = vmatprep.subr.bf16.mxu0 0
  %960 = vmatpush1.bf16.msra.mxu0 0
  %961 = vmatprep.subr.bf16.mxu0 0
  %962 = vmatpush1.bf16.msra.mxu0 0
  %963 = vmatprep.subr.bf16.mxu0 0
  %964 = vmatpush1.bf16.msra.mxu0 0
  %965 = vmatprep.subr.bf16.mxu0 0
  %966 = vmatpush1.bf16.msra.mxu0 0
  %967 = vmatprep.subr.bf16.mxu0 0
  %968 = vmatpush1.bf16.msra.mxu0 0
  %969 = vmatprep.subr.bf16.mxu0 0
  %970 = vmatpush1.bf16.msra.mxu0 0
  %971 = vmatprep.subr.bf16.mxu0 0
  %972 = vmatpush1.bf16.msra.mxu0 0
  %973 = vmatprep.mubr.bf16.mxu0 0
  %974 = vmatmul.mubr.bf16.gmra.mrb[0].mxu0 %v888
  %v975 = vpop.f32.mrb[0].mxu0
  %v976 = vadd.f32 0.0, %v975
  %v977 = vpop.f32.mrb[0].mxu0
  %v978 = vpop.f32.mrb[0].mxu0
  %v979 = vadd.f32 0.0, %v978
  %v980 = vpop.f32.mrb[0].mxu0
  %981 = vmatprep.mubr.bf16.mxu0 0
  %982 = vmatmul.mubr.bf16.gmra.mrb[0].mxu0 %v891
  %v983 = vpop.f32.mrb[0].mxu0
  %v984 = vadd.f32 0.0, %v983
  %v985 = vpop.f32.mrb[0].mxu0
  %v986 = vpop.f32.mrb[0].mxu0
  %v987 = vadd.f32 0.0, %v986
  %v988 = vpop.f32.mrb[0].mxu0
  %989 = vmatprep.mubr.bf16.mxu0 0
  %990 = vmatmul.mubr.bf16.gmra.mrb[0].mxu0 %v894
  %v991 = vpop.f32.mrb[0].mxu0
  %v992 = vadd.f32 0.0, %v991
  %v993 = vpop.f32.mrb[0].mxu0
  %v994 = vpop.f32.mrb[0].mxu0
  %v995 = vadd.f32 0.0, %v994
  %v996 = vpop.f32.mrb[0].mxu0
  %997 = vmatprep.mubr.bf16.mxu0 0
  %998 = vmatmul.mubr.bf16.gmra.mrb[0].mxu0 %v897
  %v999 = vpop.f32.mrb[0].mxu0
  %v1000 = vadd.f32 0.0, %v999
  %v1001 = vpop.f32.mrb[0].mxu0
  %v1002 = vpop.f32.mrb[0].mxu0
  %v1003 = vadd.f32 0.0, %v1002
  %v1004 = vpop.f32.mrb[0].mxu0
  %1005 = vmatprep.mubr.bf16.mxu0 0
  %1006 = vmatmul.mubr.bf16.gmra.mrb[0].mxu0 %v900
  %v1007 = vpop.f32.mrb[0].mxu0
  %v1008 = vadd.f32 0.0, %v1007
  %v1009 = vpop.f32.mrb[0].mxu0
  %v1010 = vpop.f32.mrb[0].mxu0
  %v1011 = vadd.f32 0.0, %v1010
  %v1012 = vpop.f32.mrb[0].mxu0
  %1013 = vmatprep.mubr.bf16.mxu0 0
  %1014 = vmatmul.mubr.bf16.gmra.mrb[0].mxu0 %v903
  %v1015 = vpop.f32.mrb[0].mxu0
  %v1016 = vadd.f32 0.0, %v1015
  %v1017 = vpop.f32.mrb[0].mxu0
  %v1018 = vpop.f32.mrb[0].mxu0
  %v1019 = vadd.f32 0.0, %v1018
  %v1020 = vpop.f32.mrb[0].mxu0
  %1021 = vmatprep.mubr.bf16.mxu0 0
  %1022 = vmatmul.mubr.bf16.gmra.mrb[0].mxu0 %v906
  %v1023 = vpop.f32.mrb[0].mxu0
  %v1024 = vadd.f32 0.0, %v1023
  %v1025 = vpop.f32.mrb[0].mxu0
  %v1026 = vpop.f32.mrb[0].mxu0
  %v1027 = vadd.f32 0.0, %v1026
  %v1028 = vpop.f32.mrb[0].mxu0
  %1029 = vmatprep.mubr.bf16.mxu0 0
  %1030 = vmatmul.mubr.bf16.gmra.mrb[0].mxu0 %v909
  %v1031 = vpop.f32.mrb[0].mxu0
  %v1032 = vadd.f32 0.0, %v1031
  %v1033 = vpop.f32.mrb[0].mxu0
  %v1034 = vpop.f32.mrb[0].mxu0
  %v1035 = vadd.f32 0.0, %v1034
  %v1036 = vpop.f32.mrb[0].mxu0
  %1037 = vmatprep.mubr.bf16.mxu0 0
  %1038 = vmatmul.mubr.bf16.gmra.mrb[0].mxu0 %v912
  %v1039 = vpop.f32.mrb[0].mxu0
  %v1040 = vadd.f32 0.0, %v1039
  %v1041 = vpop.f32.mrb[0].mxu0
  %v1042 = vpop.f32.mrb[0].mxu0
  %v1043 = vadd.f32 0.0, %v1042
  %v1044 = vpop.f32.mrb[0].mxu0
  %1045 = vmatprep.mubr.bf16.mxu0 0
  %1046 = vmatmul.mubr.bf16.gmra.mrb[0].mxu0 %v915
  %v1047 = vpop.f32.mrb[0].mxu0
  %v1048 = vadd.f32 0.0, %v1047
  %v1049 = vpop.f32.mrb[0].mxu0
  %v1050 = vpop.f32.mrb[0].mxu0
  %v1051 = vadd.f32 0.0, %v1050
  %v1052 = vpop.f32.mrb[0].mxu0
  %1053 = vmatprep.mubr.bf16.mxu0 0
  %1054 = vmatmul.mubr.bf16.gmra.mrb[0].mxu0 %v918
  %v1055 = vpop.f32.mrb[0].mxu0
  %v1056 = vadd.f32 0.0, %v1055
  %v1057 = vpop.f32.mrb[0].mxu0
  %v1058 = vpop.f32.mrb[0].mxu0
  %v1059 = vadd.f32 0.0, %v1058
  %v1060 = vpop.f32.mrb[0].mxu0
  %1061 = vmatprep.mubr.bf16.mxu0 0
  %1062 = vmatmul.mubr.bf16.gmra.mrb[0].mxu0 %v921
  %v1063 = vpop.f32.mrb[0].mxu0
  %v1064 = vadd.f32 0.0, %v1063
  %v1065 = vpop.f32.mrb[0].mxu0
  %v1066 = vpop.f32.mrb[0].mxu0
  %v1067 = vadd.f32 0.0, %v1066
  %v1068 = vpop.f32.mrb[0].mxu0
  %1069 = vmatprep.mubr.bf16.mxu0 0
  %1070 = vmatmul.mubr.bf16.gmra.mrb[0].mxu0 %v924
  %v1071 = vpop.f32.mrb[0].mxu0
  %v1072 = vadd.f32 0.0, %v1071
  %v1073 = vpop.f32.mrb[0].mxu0
  %v1074 = vpop.f32.mrb[0].mxu0
  %v1075 = vadd.f32 0.0, %v1074
  %v1076 = vpop.f32.mrb[0].mxu0
  %1077 = vmatprep.mubr.bf16.mxu0 0
  %1078 = vmatmul.mubr.bf16.gmra.mrb[0].mxu0 %v927
  %v1079 = vpop.f32.mrb[0].mxu0
  %v1080 = vadd.f32 0.0, %v1079
  %v1081 = vpop.f32.mrb[0].mxu0
  %v1082 = vpop.f32.mrb[0].mxu0
  %v1083 = vadd.f32 0.0, %v1082
  %v1084 = vpop.f32.mrb[0].mxu0
  %1085 = vmatprep.mubr.bf16.mxu0 0
  %1086 = vmatmul.mubr.bf16.gmra.mrb[0].mxu0 %v930
  %v1087 = vpop.f32.mrb[0].mxu0
  %v1088 = vadd.f32 0.0, %v1087
  %v1089 = vpop.f32.mrb[0].mxu0
  %v1090 = vpop.f32.mrb[0].mxu0
  %v1091 = vadd.f32 0.0, %v1090
  %v1092 = vpop.f32.mrb[0].mxu0
  %1093 = vmatprep.mubr.bf16.mxu0 0
  %1094 = vmatmul.mubr.bf16.gmra.mrb[0].mxu0 %v933
  %v1095 = vpop.f32.mrb[0].mxu0
  %v1096 = vadd.f32 0.0, %v1095
  %v1097 = vpop.f32.mrb[0].mxu0
  %v1098 = vpop.f32.mrb[0].mxu0
  %v1099 = vadd.f32 0.0, %v1098
  %v1100 = vpop.f32.mrb[0].mxu0
  %1101 = vmatprep.mubr.bf16.mxu0 0
  %1102 = vmatmul.mubr.bf16.gmra.mrb[0].mxu0 %v936
  %v1103 = vpop.f32.mrb[0].mxu0
  %v1104 = vadd.f32 0.0, %v1103
  %v1105 = vpop.f32.mrb[0].mxu0
  %v1106 = vpop.f32.mrb[0].mxu0
  %v1107 = vadd.f32 0.0, %v1106
  %v1108 = vpop.f32.mrb[0].mxu0
  %1109 = vmatprep.mubr.bf16.mxu0 0
  %1110 = vmatmul.mubr.bf16.gmra.mrb[0].mxu0 %v939
  %v1111 = vpop.f32.mrb[0].mxu0
  %v1112 = vadd.f32 0.0, %v1111
  %v1113 = vpop.f32.mrb[0].mxu0
  %v1114 = vpop.f32.mrb[0].mxu0
  %v1115 = vadd.f32 0.0, %v1114
  %v1116 = vpop.f32.mrb[0].mxu0
  %1117 = vdwg.mxu0
  %v1118 = vld [vmem:[%s3] sm:$0xf]
  %v1119 = vld [vmem:[%s3 + $0x4] sm:$0xf]
  %v1120 = vld [vmem:[%s3 + $0x8] sm:$0xf]
  %v1121 = vld [vmem:[%s3 + $0xc] sm:$0xf]
  %v1122 = vld [vmem:[%s3 + $0x10] sm:$0xf]
  %v1123 = vld [vmem:[%s3 + $0x14] sm:$0xf]
  %v1124 = vld [vmem:[%s3 + $0x18] sm:$0xf]
  %v1125 = vld [vmem:[%s3 + $0x1c] sm:$0xf]
  %v1126 = vld [vmem:[%s3 + $0x20] sm:$0xf]
  %v1127 = vld [vmem:[%s3 + $0x24] sm:$0xf]
  %v1128 = vld [vmem:[%s3 + $0x28] sm:$0xf]
  %v1129 = vld [vmem:[%s3 + $0x2c] sm:$0xf]
  %v1130 = vld [vmem:[%s3 + $0x30] sm:$0xf]
  %v1131 = vld [vmem:[%s3 + $0x34] sm:$0xf]
  %v1132 = vld [vmem:[%s3 + $0x38] sm:$0xf]
  %v1133 = vld [vmem:[%s3 + $0x3c] sm:$0xf]
  %v1134 = vld [vmem:[%s3 + $0x40] sm:$0xf]
  %v1135 = vld [vmem:[%s3 + $0x44] sm:$0xf]
  %v1136 = vld [vmem:[%s3 + $0x48] sm:$0xf]
  %v1137 = vld [vmem:[%s3 + $0x4c] sm:$0xf]
  %v1138 = vld [vmem:[%s3 + $0x50] sm:$0xf]
  %v1139 = vld [vmem:[%s3 + $0x54] sm:$0xf]
  %v1140 = vld [vmem:[%s3 + $0x58] sm:$0xf]
  %v1141 = vld [vmem:[%s3 + $0x5c] sm:$0xf]
  %v1142 = vld [vmem:[%s3 + $0x60] sm:$0xf]
  %v1143 = vld [vmem:[%s3 + $0x64] sm:$0xf]
  %v1144 = vld [vmem:[%s3 + $0x68] sm:$0xf]
  %v1145 = vld [vmem:[%s3 + $0x6c] sm:$0xf]
  %v1146 = vld [vmem:[%s3 + $0x70] sm:$0xf]
  %v1147 = vld [vmem:[%s3 + $0x74] sm:$0xf]
  %v1148 = vld [vmem:[%s3 + $0x78] sm:$0xf]
  %v1149 = vld [vmem:[%s3 + $0x7c] sm:$0xf]
  %v1150 = vld [vmem:[%s3 + $0x80] sm:$0xf]
  %v1151 = vld [vmem:[%s3 + $0x84] sm:$0xf]
  %v1152 = vld [vmem:[%s3 + $0x88] sm:$0xf]
  %v1153 = vld [vmem:[%s3 + $0x8c] sm:$0xf]
  %v1190 = vunpack.c.l.b16 %v1118
  %v1191 = vunpack.c.l.b16 %v1119
  %v1192 = vunpack.c.l.b16 %v1120
  %v1193 = vunpack.c.l.b16 %v1121
  %v1194 = vunpack.c.l.b16 %v1122
  %v1195 = vunpack.c.l.b16 %v1123
  %v1196 = vunpack.c.l.b16 %v1124
  %v1197 = vunpack.c.l.b16 %v1125
  %v1198 = vunpack.c.l.b16 %v1126
  %v1199 = vunpack.c.l.b16 %v1127
  %v1200 = vunpack.c.l.b16 %v1128
  %v1201 = vunpack.c.l.b16 %v1129
  %v1202 = vunpack.c.l.b16 %v1130
  %v1203 = vunpack.c.l.b16 %v1131
  %v1204 = vunpack.c.l.b16 %v1132
  %v1205 = vunpack.c.l.b16 %v1133
  %v1206 = vunpack.c.l.b16 %v1134
  %v1207 = vunpack.c.l.b16 %v1135
  %v1208 = vunpack.c.l.b16 %v1136
  %v1209 = vunpack.c.l.b16 %v1137
  %v1210 = vunpack.c.l.b16 %v1138
  %v1211 = vunpack.c.l.b16 %v1139
  %v1212 = vunpack.c.l.b16 %v1140
  %v1213 = vunpack.c.l.b16 %v1141
  %v1214 = vunpack.c.l.b16 %v1142
  %v1215 = vunpack.c.l.b16 %v1143
  %v1216 = vunpack.c.l.b16 %v1144
  %v1217 = vunpack.c.l.b16 %v1145
  %v1218 = vunpack.c.l.b16 %v1146
  %v1219 = vunpack.c.l.b16 %v1147
  %v1220 = vunpack.c.l.b16 %v1148
  %v1221 = vunpack.c.l.b16 %v1149
  %v1222 = vunpack.c.l.b16 %v1150
  %v1223 = vunpack.c.l.b16 %v1151
  %v1224 = vunpack.c.l.b16 %v1152
  %v1225 = vunpack.c.l.b16 %v1153
  %v1226 = vpack.c.b16 %v1191, %v1190
  %v1227 = vpack.c.b16 %v1193, %v1192
  %v1228 = vpack.c.b16 %v1195, %v1194
  %v1229 = vpack.c.b16 %v1197, %v1196
  %v1230 = vpack.c.b16 %v1199, %v1198
  %v1231 = vpack.c.b16 %v1201, %v1200
  %v1232 = vpack.c.b16 %v1203, %v1202
  %v1233 = vpack.c.b16 %v1205, %v1204
  %v1234 = vpack.c.b16 %v1207, %v1206
  %v1235 = vpack.c.b16 %v1209, %v1208
  %v1236 = vpack.c.b16 %v1211, %v1210
  %v1237 = vpack.c.b16 %v1213, %v1212
  %v1238 = vpack.c.b16 %v1215, %v1214
  %v1239 = vpack.c.b16 %v1217, %v1216
  %v1240 = vpack.c.b16 %v1219, %v1218
  %v1241 = vpack.c.b16 %v1221, %v1220
  %v1242 = vpack.c.b16 %v1223, %v1222
  %v1243 = vpack.c.b16 %v1225, %v1224
  %v1245 = vsel %vm165, %v1226, 0
  %v1248 = vsel %vm165, %v1227, 0
  %v1251 = vsel %vm165, %v1228, 0
  %v1254 = vsel %vm165, %v1229, 0
  %v1257 = vsel %vm165, %v1230, 0
  %v1260 = vsel %vm165, %v1231, 0
  %v1263 = vsel %vm165, %v1232, 0
  %v1266 = vsel %vm165, %v1233, 0
  %v1269 = vsel %vm165, %v1234, 0
  %v1272 = vsel %vm165, %v1235, 0
  %v1275 = vsel %vm165, %v1236, 0
  %v1278 = vsel %vm165, %v1237, 0
  %v1281 = vsel %vm165, %v1238, 0
  %v1284 = vsel %vm165, %v1239, 0
  %v1287 = vsel %vm165, %v1240, 0
  %v1290 = vsel %vm165, %v1241, 0
  %v1293 = vsel %vm165, %v1242, 0
  %v1296 = vsel %vm165, %v1243, 0
  %1298 = vmatprep.subr.bf16.mxu0 0
  %1299 = vmatpush1.bf16.msra.mxu0 %v162
  %1300 = vmatprep.subr.bf16.mxu0 0
  %1301 = vmatpush1.bf16.msra.mxu0 %v225
  %1302 = vmatprep.subr.bf16.mxu0 0
  %1303 = vmatpush1.bf16.msra.mxu0 0
  %1304 = vmatprep.subr.bf16.mxu0 0
  %1305 = vmatpush1.bf16.msra.mxu0 0
  %1306 = vmatprep.subr.bf16.mxu0 0
  %1307 = vmatpush1.bf16.msra.mxu0 0
  %1308 = vmatprep.subr.bf16.mxu0 0
  %1309 = vmatpush1.bf16.msra.mxu0 0
  %1310 = vmatprep.subr.bf16.mxu0 0
  %1311 = vmatpush1.bf16.msra.mxu0 0
  %1312 = vmatprep.subr.bf16.mxu0 0
  %1313 = vmatpush1.bf16.msra.mxu0 0
  %1314 = vmatprep.subr.bf16.mxu0 0
  %1315 = vmatpush1.bf16.msra.mxu0 0
  %1316 = vmatprep.subr.bf16.mxu0 0
  %1317 = vmatpush1.bf16.msra.mxu0 0
  %1318 = vmatprep.subr.bf16.mxu0 0
  %1319 = vmatpush1.bf16.msra.mxu0 0
  %1320 = vmatprep.subr.bf16.mxu0 0
  %1321 = vmatpush1.bf16.msra.mxu0 0
  %1322 = vmatprep.subr.bf16.mxu0 0
  %1323 = vmatpush1.bf16.msra.mxu0 0
  %1324 = vmatprep.subr.bf16.mxu0 0
  %1325 = vmatpush1.bf16.msra.mxu0 0
  %1326 = vmatprep.subr.bf16.mxu0 0
  %1327 = vmatpush1.bf16.msra.mxu0 0
  %1328 = vmatprep.subr.bf16.mxu0 0
  %1329 = vmatpush1.bf16.msra.mxu0 0
  %1330 = vmatprep.mubr.bf16.mxu0 0
  %1331 = vmatmul.mubr.bf16.gmra.mrb[0].mxu0 %v1245
  %v1332 = vpop.f32.mrb[0].mxu0
  %v1333 = vadd.f32 0.0, %v1332
  %v1334 = vpop.f32.mrb[0].mxu0
  %v1335 = vpop.f32.mrb[0].mxu0
  %v1336 = vadd.f32 0.0, %v1335
  %v1337 = vpop.f32.mrb[0].mxu0
  %1338 = vmatprep.mubr.bf16.mxu0 0
  %1339 = vmatmul.mubr.bf16.gmra.mrb[0].mxu0 %v1248
  %v1340 = vpop.f32.mrb[0].mxu0
  %v1341 = vadd.f32 0.0, %v1340
  %v1342 = vpop.f32.mrb[0].mxu0
  %v1343 = vpop.f32.mrb[0].mxu0
  %v1344 = vadd.f32 0.0, %v1343
  %v1345 = vpop.f32.mrb[0].mxu0
  %1346 = vmatprep.mubr.bf16.mxu0 0
  %1347 = vmatmul.mubr.bf16.gmra.mrb[0].mxu0 %v1251
  %v1348 = vpop.f32.mrb[0].mxu0
  %v1349 = vadd.f32 0.0, %v1348
  %v1350 = vpop.f32.mrb[0].mxu0
  %v1351 = vpop.f32.mrb[0].mxu0
  %v1352 = vadd.f32 0.0, %v1351
  %v1353 = vpop.f32.mrb[0].mxu0
  %1354 = vmatprep.mubr.bf16.mxu0 0
  %1355 = vmatmul.mubr.bf16.gmra.mrb[0].mxu0 %v1254
  %v1356 = vpop.f32.mrb[0].mxu0
  %v1357 = vadd.f32 0.0, %v1356
  %v1358 = vpop.f32.mrb[0].mxu0
  %v1359 = vpop.f32.mrb[0].mxu0
  %v1360 = vadd.f32 0.0, %v1359
  %v1361 = vpop.f32.mrb[0].mxu0
  %1362 = vmatprep.mubr.bf16.mxu0 0
  %1363 = vmatmul.mubr.bf16.gmra.mrb[0].mxu0 %v1257
  %v1364 = vpop.f32.mrb[0].mxu0
  %v1365 = vadd.f32 0.0, %v1364
  %v1366 = vpop.f32.mrb[0].mxu0
  %v1367 = vpop.f32.mrb[0].mxu0
  %v1368 = vadd.f32 0.0, %v1367
  %v1369 = vpop.f32.mrb[0].mxu0
  %1370 = vmatprep.mubr.bf16.mxu0 0
  %1371 = vmatmul.mubr.bf16.gmra.mrb[0].mxu0 %v1260
  %v1372 = vpop.f32.mrb[0].mxu0
  %v1373 = vadd.f32 0.0, %v1372
  %v1374 = vpop.f32.mrb[0].mxu0
  %v1375 = vpop.f32.mrb[0].mxu0
  %v1376 = vadd.f32 0.0, %v1375
  %v1377 = vpop.f32.mrb[0].mxu0
  %1378 = vmatprep.mubr.bf16.mxu0 0
  %1379 = vmatmul.mubr.bf16.gmra.mrb[0].mxu0 %v1263
  %v1380 = vpop.f32.mrb[0].mxu0
  %v1381 = vadd.f32 0.0, %v1380
  %v1382 = vpop.f32.mrb[0].mxu0
  %v1383 = vpop.f32.mrb[0].mxu0
  %v1384 = vadd.f32 0.0, %v1383
  %v1385 = vpop.f32.mrb[0].mxu0
  %1386 = vmatprep.mubr.bf16.mxu0 0
  %1387 = vmatmul.mubr.bf16.gmra.mrb[0].mxu0 %v1266
  %v1388 = vpop.f32.mrb[0].mxu0
  %v1389 = vadd.f32 0.0, %v1388
  %v1390 = vpop.f32.mrb[0].mxu0
  %v1391 = vpop.f32.mrb[0].mxu0
  %v1392 = vadd.f32 0.0, %v1391
  %v1393 = vpop.f32.mrb[0].mxu0
  %1394 = vmatprep.mubr.bf16.mxu0 0
  %1395 = vmatmul.mubr.bf16.gmra.mrb[0].mxu0 %v1269
  %v1396 = vpop.f32.mrb[0].mxu0
  %v1397 = vadd.f32 0.0, %v1396
  %v1398 = vpop.f32.mrb[0].mxu0
  %v1399 = vpop.f32.mrb[0].mxu0
  %v1400 = vadd.f32 0.0, %v1399
  %v1401 = vpop.f32.mrb[0].mxu0
  %1402 = vmatprep.mubr.bf16.mxu0 0
  %1403 = vmatmul.mubr.bf16.gmra.mrb[0].mxu0 %v1272
  %v1404 = vpop.f32.mrb[0].mxu0
  %v1405 = vadd.f32 0.0, %v1404
  %v1406 = vpop.f32.mrb[0].mxu0
  %v1407 = vpop.f32.mrb[0].mxu0
  %v1408 = vadd.f32 0.0, %v1407
  %v1409 = vpop.f32.mrb[0].mxu0
  %1410 = vmatprep.mubr.bf16.mxu0 0
  %1411 = vmatmul.mubr.bf16.gmra.mrb[0].mxu0 %v1275
  %v1412 = vpop.f32.mrb[0].mxu0
  %v1413 = vadd.f32 0.0, %v1412
  %v1414 = vpop.f32.mrb[0].mxu0
  %v1415 = vpop.f32.mrb[0].mxu0
  %v1416 = vadd.f32 0.0, %v1415
  %v1417 = vpop.f32.mrb[0].mxu0
  %1418 = vmatprep.mubr.bf16.mxu0 0
  %1419 = vmatmul.mubr.bf16.gmra.mrb[0].mxu0 %v1278
  %v1420 = vpop.f32.mrb[0].mxu0
  %v1421 = vadd.f32 0.0, %v1420
  %v1422 = vpop.f32.mrb[0].mxu0
  %v1423 = vpop.f32.mrb[0].mxu0
  %v1424 = vadd.f32 0.0, %v1423
  %v1425 = vpop.f32.mrb[0].mxu0
  %1426 = vmatprep.mubr.bf16.mxu0 0
  %1427 = vmatmul.mubr.bf16.gmra.mrb[0].mxu0 %v1281
  %v1428 = vpop.f32.mrb[0].mxu0
  %v1429 = vadd.f32 0.0, %v1428
  %v1430 = vpop.f32.mrb[0].mxu0
  %v1431 = vpop.f32.mrb[0].mxu0
  %v1432 = vadd.f32 0.0, %v1431
  %v1433 = vpop.f32.mrb[0].mxu0
  %1434 = vmatprep.mubr.bf16.mxu0 0
  %1435 = vmatmul.mubr.bf16.gmra.mrb[0].mxu0 %v1284
  %v1436 = vpop.f32.mrb[0].mxu0
  %v1437 = vadd.f32 0.0, %v1436
  %v1438 = vpop.f32.mrb[0].mxu0
  %v1439 = vpop.f32.mrb[0].mxu0
  %v1440 = vadd.f32 0.0, %v1439
  %v1441 = vpop.f32.mrb[0].mxu0
  %1442 = vmatprep.mubr.bf16.mxu0 0
  %1443 = vmatmul.mubr.bf16.gmra.mrb[0].mxu0 %v1287
  %v1444 = vpop.f32.mrb[0].mxu0
  %v1445 = vadd.f32 0.0, %v1444
  %v1446 = vpop.f32.mrb[0].mxu0
  %v1447 = vpop.f32.mrb[0].mxu0
  %v1448 = vadd.f32 0.0, %v1447
  %v1449 = vpop.f32.mrb[0].mxu0
  %1450 = vmatprep.mubr.bf16.mxu0 0
  %1451 = vmatmul.mubr.bf16.gmra.mrb[0].mxu0 %v1290
  %v1452 = vpop.f32.mrb[0].mxu0
  %v1453 = vadd.f32 0.0, %v1452
  %v1454 = vpop.f32.mrb[0].mxu0
  %v1455 = vpop.f32.mrb[0].mxu0
  %v1456 = vadd.f32 0.0, %v1455
  %v1457 = vpop.f32.mrb[0].mxu0
  %1458 = vmatprep.mubr.bf16.mxu0 0
  %1459 = vmatmul.mubr.bf16.gmra.mrb[0].mxu0 %v1293
  %v1460 = vpop.f32.mrb[0].mxu0
  %v1461 = vadd.f32 0.0, %v1460
  %v1462 = vpop.f32.mrb[0].mxu0
  %v1463 = vpop.f32.mrb[0].mxu0
  %v1464 = vadd.f32 0.0, %v1463
  %v1465 = vpop.f32.mrb[0].mxu0
  %1466 = vmatprep.mubr.bf16.mxu0 0
  %1467 = vmatmul.mubr.bf16.gmra.mrb[0].mxu0 %v1296
  %v1468 = vpop.f32.mrb[0].mxu0
  %v1469 = vadd.f32 0.0, %v1468
  %v1470 = vpop.f32.mrb[0].mxu0
  %v1471 = vpop.f32.mrb[0].mxu0
  %v1472 = vadd.f32 0.0, %v1471
  %v1473 = vpop.f32.mrb[0].mxu0
  %1474 = vdwg.mxu0
  %v1475 = vmax.f32 %v262, %v619
  %v1476 = vmax.f32 %v265, %v622
  %v1477 = vmax.f32 %v270, %v627
  %v1478 = vmax.f32 %v273, %v630
  %v1479 = vmax.f32 %v278, %v635
  %v1480 = vmax.f32 %v281, %v638
  %v1481 = vmax.f32 %v286, %v643
  %v1482 = vmax.f32 %v289, %v646
  %v1483 = vmax.f32 %v294, %v651
  %v1484 = vmax.f32 %v297, %v654
  %v1485 = vmax.f32 %v302, %v659
  %v1486 = vmax.f32 %v305, %v662
  %v1487 = vmax.f32 %v310, %v667
  %v1488 = vmax.f32 %v313, %v670
  %v1489 = vmax.f32 %v318, %v675
  %v1490 = vmax.f32 %v321, %v678
  %v1491 = vmax.f32 %v326, %v683
  %v1492 = vmax.f32 %v329, %v686
  %v1493 = vmax.f32 %v334, %v691
  %v1494 = vmax.f32 %v337, %v694
  %v1495 = vmax.f32 %v342, %v699
  %v1496 = vmax.f32 %v345, %v702
  %v1497 = vmax.f32 %v350, %v707
  %v1498 = vmax.f32 %v353, %v710
  %v1499 = vmax.f32 %v358, %v715
  %v1500 = vmax.f32 %v361, %v718
  %v1501 = vmax.f32 %v366, %v723
  %v1502 = vmax.f32 %v369, %v726
  %v1503 = vmax.f32 %v374, %v731
  %v1504 = vmax.f32 %v377, %v734
  %v1505 = vmax.f32 %v382, %v739
  %v1506 = vmax.f32 %v385, %v742
  %v1507 = vmax.f32 %v390, %v747
  %v1508 = vmax.f32 %v393, %v750
  %v1509 = vmax.f32 %v398, %v755
  %v1510 = vmax.f32 %v401, %v758
  %v1511 = vmax.f32 %v976, %v1333
  %v1512 = vmax.f32 %v979, %v1336
  %v1513 = vmax.f32 %v984, %v1341
  %v1514 = vmax.f32 %v987, %v1344
  %v1515 = vmax.f32 %v992, %v1349
  %v1516 = vmax.f32 %v995, %v1352
  %v1517 = vmax.f32 %v1000, %v1357
  %v1518 = vmax.f32 %v1003, %v1360
  %v1519 = vmax.f32 %v1008, %v1365
  %v1520 = vmax.f32 %v1011, %v1368
  %v1521 = vmax.f32 %v1016, %v1373
  %v1522 = vmax.f32 %v1019, %v1376
  %v1523 = vmax.f32 %v1024, %v1381
  %v1524 = vmax.f32 %v1027, %v1384
  %v1525 = vmax.f32 %v1032, %v1389
  %v1526 = vmax.f32 %v1035, %v1392
  %v1527 = vmax.f32 %v1040, %v1397
  %v1528 = vmax.f32 %v1043, %v1400
  %v1529 = vmax.f32 %v1048, %v1405
  %v1530 = vmax.f32 %v1051, %v1408
  %v1531 = vmax.f32 %v1056, %v1413
  %v1532 = vmax.f32 %v1059, %v1416
  %v1533 = vmax.f32 %v1064, %v1421
  %v1534 = vmax.f32 %v1067, %v1424
  %v1535 = vmax.f32 %v1072, %v1429
  %v1536 = vmax.f32 %v1075, %v1432
  %v1537 = vmax.f32 %v1080, %v1437
  %v1538 = vmax.f32 %v1083, %v1440
  %v1539 = vmax.f32 %v1088, %v1445
  %v1540 = vmax.f32 %v1091, %v1448
  %v1541 = vmax.f32 %v1096, %v1453
  %v1542 = vmax.f32 %v1099, %v1456
  %v1543 = vmax.f32 %v1104, %v1461
  %v1544 = vmax.f32 %v1107, %v1464
  %v1545 = vmax.f32 %v1112, %v1469
  %v1546 = vmax.f32 %v1115, %v1472
  %v1547 = vmax.f32 %v1475, %v1511
  %v1548 = vmax.f32 %v1476, %v1512
  %v1549 = vmax.f32 %v1477, %v1513
  %v1550 = vmax.f32 %v1478, %v1514
  %v1551 = vmax.f32 %v1479, %v1515
  %v1552 = vmax.f32 %v1480, %v1516
  %v1553 = vmax.f32 %v1481, %v1517
  %v1554 = vmax.f32 %v1482, %v1518
  %v1555 = vmax.f32 %v1483, %v1519
  %v1556 = vmax.f32 %v1484, %v1520
  %v1557 = vmax.f32 %v1485, %v1521
  %v1558 = vmax.f32 %v1486, %v1522
  %v1559 = vmax.f32 %v1487, %v1523
  %v1560 = vmax.f32 %v1488, %v1524
  %v1561 = vmax.f32 %v1489, %v1525
  %v1562 = vmax.f32 %v1490, %v1526
  %v1563 = vmax.f32 %v1491, %v1527
  %v1564 = vmax.f32 %v1492, %v1528
  %v1565 = vmax.f32 %v1493, %v1529
  %v1566 = vmax.f32 %v1494, %v1530
  %v1567 = vmax.f32 %v1495, %v1531
  %v1568 = vmax.f32 %v1496, %v1532
  %v1569 = vmax.f32 %v1497, %v1533
  %v1570 = vmax.f32 %v1498, %v1534
  %v1571 = vmax.f32 %v1499, %v1535
  %v1572 = vmax.f32 %v1500, %v1536
  %v1573 = vmax.f32 %v1501, %v1537
  %v1574 = vmax.f32 %v1502, %v1538
  %v1575 = vmax.f32 %v1503, %v1539
  %v1576 = vmax.f32 %v1504, %v1540
  %v1577 = vmax.f32 %v1505, %v1541
  %v1578 = vmax.f32 %v1506, %v1542
  %v1579 = vmax.f32 %v1507, %v1543
  %v1580 = vmax.f32 %v1508, %v1544
  %v1581 = vmax.f32 %v1509, %v1545
  %v1582 = vmax.f32 %v1510, %v1546
  %v1583 = vld [vmem:[%s5] sm:$0x1]
  %v1585 = vlaneseq
  %v1586 = vshrl.u32 %v1585, 7
  %v1587 = vsub.s32 0, %v1586
  %v1588 = vrot.slane %v1583, %v1587
  %v1590 = vadd.f32 %v1547, %v1588
  %v1591 = vadd.f32 %v1548, %v1588
  %v1592 = vadd.f32 %v1549, %v1588
  %v1593 = vadd.f32 %v1550, %v1588
  %v1594 = vadd.f32 %v1551, %v1588
  %v1595 = vadd.f32 %v1552, %v1588
  %v1596 = vadd.f32 %v1553, %v1588
  %v1597 = vadd.f32 %v1554, %v1588
  %v1598 = vadd.f32 %v1555, %v1588
  %v1599 = vadd.f32 %v1556, %v1588
  %v1600 = vadd.f32 %v1557, %v1588
  %v1601 = vadd.f32 %v1558, %v1588
  %v1602 = vadd.f32 %v1559, %v1588
  %v1603 = vadd.f32 %v1560, %v1588
  %v1604 = vadd.f32 %v1561, %v1588
  %v1605 = vadd.f32 %v1562, %v1588
  %v1606 = vadd.f32 %v1563, %v1588
  %v1607 = vadd.f32 %v1564, %v1588
  %v1608 = vadd.f32 %v1565, %v1588
  %v1609 = vadd.f32 %v1566, %v1588
  %v1610 = vadd.f32 %v1567, %v1588
  %v1611 = vadd.f32 %v1568, %v1588
  %v1612 = vadd.f32 %v1569, %v1588
  %v1613 = vadd.f32 %v1570, %v1588
  %v1614 = vadd.f32 %v1571, %v1588
  %v1615 = vadd.f32 %v1572, %v1588
  %v1616 = vadd.f32 %v1573, %v1588
  %v1617 = vadd.f32 %v1574, %v1588
  %v1618 = vadd.f32 %v1575, %v1588
  %v1619 = vadd.f32 %v1576, %v1588
  %v1620 = vadd.f32 %v1577, %v1588
  %v1621 = vadd.f32 %v1578, %v1588
  %v1622 = vadd.f32 %v1579, %v1588
  %v1623 = vadd.f32 %v1580, %v1588
  %v1624 = vadd.f32 %v1581, %v1588
  %v1625 = vadd.f32 %v1582, %v1588
  %v1626 = vmax.f32 %v1590, 0.0
  %v1627 = vmax.f32 %v1591, 0.0
  %v1628 = vmax.f32 %v1592, 0.0
  %v1629 = vmax.f32 %v1593, 0.0
  %v1630 = vmax.f32 %v1594, 0.0
  %v1631 = vmax.f32 %v1595, 0.0
  %v1632 = vmax.f32 %v1596, 0.0
  %v1633 = vmax.f32 %v1597, 0.0
  %v1634 = vmax.f32 %v1598, 0.0
  %v1635 = vmax.f32 %v1599, 0.0
  %v1636 = vmax.f32 %v1600, 0.0
  %v1637 = vmax.f32 %v1601, 0.0
  %v1638 = vmax.f32 %v1602, 0.0
  %v1639 = vmax.f32 %v1603, 0.0
  %v1640 = vmax.f32 %v1604, 0.0
  %v1641 = vmax.f32 %v1605, 0.0
  %v1642 = vmax.f32 %v1606, 0.0
  %v1643 = vmax.f32 %v1607, 0.0
  %v1644 = vmax.f32 %v1608, 0.0
  %v1645 = vmax.f32 %v1609, 0.0
  %v1646 = vmax.f32 %v1610, 0.0
  %v1647 = vmax.f32 %v1611, 0.0
  %v1648 = vmax.f32 %v1612, 0.0
  %v1649 = vmax.f32 %v1613, 0.0
  %v1650 = vmax.f32 %v1614, 0.0
  %v1651 = vmax.f32 %v1615, 0.0
  %v1652 = vmax.f32 %v1616, 0.0
  %v1653 = vmax.f32 %v1617, 0.0
  %v1654 = vmax.f32 %v1618, 0.0
  %v1655 = vmax.f32 %v1619, 0.0
  %v1656 = vmax.f32 %v1620, 0.0
  %v1657 = vmax.f32 %v1621, 0.0
  %v1658 = vmax.f32 %v1622, 0.0
  %v1659 = vmax.f32 %v1623, 0.0
  %v1660 = vmax.f32 %v1624, 0.0
  %v1661 = vmax.f32 %v1625, 0.0
  %vm1662 = vcmask 130048
  %1663 = vst.msk [vmem:[%s6] sm:$0xff] %vm1662, %v1626
  %1664 = vst.msk [vmem:[%s6 + $0x8] sm:$0xff] %vm1662, %v1627
  %1665 = vst.msk [vmem:[%s6 + $0x10] sm:$0xff] %vm1662, %v1628
  %1666 = vst.msk [vmem:[%s6 + $0x18] sm:$0xff] %vm1662, %v1629
  %1667 = vst.msk [vmem:[%s6 + $0x20] sm:$0xff] %vm1662, %v1630
  %1668 = vst.msk [vmem:[%s6 + $0x28] sm:$0xff] %vm1662, %v1631
  %1669 = vst.msk [vmem:[%s6 + $0x30] sm:$0xff] %vm1662, %v1632
  %1670 = vst.msk [vmem:[%s6 + $0x38] sm:$0xff] %vm1662, %v1633
  %1671 = vst.msk [vmem:[%s6 + $0x40] sm:$0xff] %vm1662, %v1634
  %1672 = vst.msk [vmem:[%s6 + $0x48] sm:$0xff] %vm1662, %v1635
  %1673 = vst.msk [vmem:[%s6 + $0x50] sm:$0xff] %vm1662, %v1636
  %1674 = vst.msk [vmem:[%s6 + $0x58] sm:$0xff] %vm1662, %v1637
  %1675 = vst.msk [vmem:[%s6 + $0x60] sm:$0xff] %vm1662, %v1638
  %1676 = vst.msk [vmem:[%s6 + $0x68] sm:$0xff] %vm1662, %v1639
  %1677 = vst.msk [vmem:[%s6 + $0x70] sm:$0xff] %vm1662, %v1640
  %1678 = vst.msk [vmem:[%s6 + $0x78] sm:$0xff] %vm1662, %v1641
  %1679 = vst.msk [vmem:[%s6 + $0x80] sm:$0xff] %vm1662, %v1642
  %1680 = vst.msk [vmem:[%s6 + $0x88] sm:$0xff] %vm1662, %v1643
  %1681 = vst.msk [vmem:[%s6 + $0x90] sm:$0xff] %vm1662, %v1644
  %1682 = vst.msk [vmem:[%s6 + $0x98] sm:$0xff] %vm1662, %v1645
  %1683 = vst.msk [vmem:[%s6 + $0xa0] sm:$0xff] %vm1662, %v1646
  %1684 = vst.msk [vmem:[%s6 + $0xa8] sm:$0xff] %vm1662, %v1647
  %1685 = vst.msk [vmem:[%s6 + $0xb0] sm:$0xff] %vm1662, %v1648
  %1686 = vst.msk [vmem:[%s6 + $0xb8] sm:$0xff] %vm1662, %v1649
  %1687 = vst.msk [vmem:[%s6 + $0xc0] sm:$0xff] %vm1662, %v1650
  %1688 = vst.msk [vmem:[%s6 + $0xc8] sm:$0xff] %vm1662, %v1651
  %1689 = vst.msk [vmem:[%s6 + $0xd0] sm:$0xff] %vm1662, %v1652
  %1690 = vst.msk [vmem:[%s6 + $0xd8] sm:$0xff] %vm1662, %v1653
  %1691 = vst.msk [vmem:[%s6 + $0xe0] sm:$0xff] %vm1662, %v1654
  %1692 = vst.msk [vmem:[%s6 + $0xe8] sm:$0xff] %vm1662, %v1655
  %1693 = vst.msk [vmem:[%s6 + $0xf0] sm:$0xff] %vm1662, %v1656
  %1694 = vst.msk [vmem:[%s6 + $0xf8] sm:$0xff] %vm1662, %v1657
  %1695 = vst.msk [vmem:[%s6 + $0x100] sm:$0xff] %vm1662, %v1658
  %1696 = vst.msk [vmem:[%s6 + $0x108] sm:$0xff] %vm1662, %v1659
  %1697 = vst.msk [vmem:[%s6 + $0x110] sm:$0xff] %vm1662, %v1660
  %1698 = vst.msk [vmem:[%s6 + $0x118] sm:$0xff] %vm1662, %v1661
  // Predicated region
  $region26: #{myconv_forward.3} parent=0 // pred_check
    _
  $region27: #{myconv_forward.3} parent=0 // pred_check_branch
    %1700 = sbr.rel (0) target = $region29
  $region28: #{myconv_forward.3} parent=0 // pred_region
    _
  $region29: #{myconv_forward.3} parent=0 // pred_fallthru
    _
  // Predicated region
  $region30: #{myconv_forward.3} parent=0 // pred_check
    _
  $region31: #{myconv_forward.3} parent=0 // pred_check_branch
    %1702 = sbr.rel (0) target = $region33
  $region32: #{myconv_forward.3} parent=0 // pred_region
    _
  $region33: #{myconv_forward.3} parent=0 // pred_fallthru
    _

// kernel: myconv_forward.4
$region0: #{myconv_forward.4}
  #allocation0 [shape = 'u32[]', space=smem, size = 0x4, offset = 0x4, fixed_abs, tag = 'smem constant byte address 0x4 - core index']
  #allocation1 [shape = 'u32[144,128]{1,0:T(1,128)}', space=vmem, size = 0x12000, scoped, tag = 'internal scratch']
  %s0 = inlined_call_operand.vmem [shape: bf16[32,400], index: 0, kind: input, shape index: {}]
  %s1 = inlined_call_operand.vmem [shape: bf16[32,400], index: 1, kind: input, shape index: {}]
  %s2 = inlined_call_operand.vmem [shape: bf16[32,400], index: 2, kind: input, shape index: {}]
  %s3 = inlined_call_operand.vmem [shape: bf16[32,400], index: 3, kind: input, shape index: {}]
  %s4 = inlined_call_operand.vmem [shape: bf16[400,32], index: 4, kind: input, shape index: {}]
  %s5 = inlined_call_operand.vmem [shape: f32[1,32], index: 5, kind: input, shape index: {}]
  %s6 = inlined_call_operand.vmem [shape: f32[32,32], index: 6, kind: output, shape index: {}]
  %s7 = sld [smem:[#allocation0]]
  $region34: #{myconv_forward.4} parent=0
    _
  %s9 = ssub.s32 1, %s7
  %s10 = scalar_select 0, %s9, %s7
  // Predicated region
  $region2: #{myconv_forward.4} parent=0 // pred_check
    _
  $region3: #{myconv_forward.4} parent=0 // pred_check_branch
    %12 = sbr.rel (0) target = $region5
  $region4: #{myconv_forward.4} parent=0 // pred_region
    _
  $region5: #{myconv_forward.4} parent=0 // pred_fallthru
    _
  // Predicated region
  $region6: #{myconv_forward.4} parent=0 // pred_check
    _
  $region7: #{myconv_forward.4} parent=0 // pred_check_branch
    %14 = sbr.rel (0) target = $region9
  $region8: #{myconv_forward.4} parent=0 // pred_region
    _
  $region9: #{myconv_forward.4} parent=0 // pred_fallthru
    _
  // Predicated region
  $region10: #{myconv_forward.4} parent=0 // pred_check
    _
  $region11: #{myconv_forward.4} parent=0 // pred_check_branch
    %16 = sbr.rel (0) target = $region13
  $region12: #{myconv_forward.4} parent=0 // pred_region
    _
  $region13: #{myconv_forward.4} parent=0 // pred_fallthru
    _
  // Predicated region
  $region14: #{myconv_forward.4} parent=0 // pred_check
    _
  $region15: #{myconv_forward.4} parent=0 // pred_check_branch
    %18 = sbr.rel (0) target = $region17
  $region16: #{myconv_forward.4} parent=0 // pred_region
    _
  $region17: #{myconv_forward.4} parent=0 // pred_fallthru
    _
  // Predicated region
  $region18: #{myconv_forward.4} parent=0 // pred_check
    _
  $region19: #{myconv_forward.4} parent=0 // pred_check_branch
    %20 = sbr.rel (0) target = $region21
  $region20: #{myconv_forward.4} parent=0 // pred_region
    _
  $region21: #{myconv_forward.4} parent=0 // pred_fallthru
    _
  // Predicated region
  $region22: #{myconv_forward.4} parent=0 // pred_check
    _
  $region23: #{myconv_forward.4} parent=0 // pred_check_branch
    %22 = sbr.rel (0) target = $region25
  $region24: #{myconv_forward.4} parent=0 // pred_region
    _
  $region25: #{myconv_forward.4} parent=0 // pred_fallthru
    _
  %v24 = vld [vmem:[%s4] sm:$0xf]
  %v25 = vld [vmem:[%s4 + $0x4] sm:$0xf]
  %v26 = vld [vmem:[%s4 + $0x8] sm:$0xf]
  %v27 = vld [vmem:[%s4 + $0xc] sm:$0xf]
  %v28 = vld [vmem:[%s4 + $0x10] sm:$0xf]
  %v29 = vld [vmem:[%s4 + $0x14] sm:$0xf]
  %v30 = vld [vmem:[%s4 + $0x18] sm:$0xf]
  %v31 = vld [vmem:[%s4 + $0x1c] sm:$0xf]
  %v32 = vld [vmem:[%s4 + $0x20] sm:$0xf]
  %v33 = vld [vmem:[%s4 + $0x24] sm:$0xf]
  %v34 = vld [vmem:[%s4 + $0x28] sm:$0xf]
  %v35 = vld [vmem:[%s4 + $0x2c] sm:$0xf]
  %v36 = vld [vmem:[%s4 + $0x30] sm:$0xf]
  %v37 = vld [vmem:[%s4 + $0x34] sm:$0xf]
  %v38 = vld [vmem:[%s4 + $0x38] sm:$0xf]
  %v39 = vld [vmem:[%s4 + $0x3c] sm:$0xf]
  %v40 = vld [vmem:[%s4 + $0x40] sm:$0xf]
  %v41 = vld [vmem:[%s4 + $0x44] sm:$0xf]
  %v42 = vld [vmem:[%s4 + $0x48] sm:$0xf]
  %v43 = vld [vmem:[%s4 + $0x4c] sm:$0xf]
  %v44 = vld [vmem:[%s4 + $0x50] sm:$0xf]
  %v45 = vld [vmem:[%s4 + $0x54] sm:$0xf]
  %v46 = vld [vmem:[%s4 + $0x58] sm:$0xf]
  %v47 = vld [vmem:[%s4 + $0x5c] sm:$0xf]
  %v48 = vld [vmem:[%s4 + $0x60] sm:$0xf]
  %v49 = vld [vmem:[%s4 + $0x64] sm:$0xf]
  %v50 = vld [vmem:[%s4 + $0x68] sm:$0xf]
  %v51 = vld [vmem:[%s4 + $0x6c] sm:$0xf]
  %v52 = vld [vmem:[%s4 + $0x70] sm:$0xf]
  %v53 = vld [vmem:[%s4 + $0x74] sm:$0xf]
  %v54 = vld [vmem:[%s4 + $0x78] sm:$0xf]
  %v55 = vld [vmem:[%s4 + $0x7c] sm:$0xf]
  %v56 = vld [vmem:[%s4 + $0x80] sm:$0xf]
  %v57 = vld [vmem:[%s4 + $0x84] sm:$0xf]
  %v58 = vld [vmem:[%s4 + $0x88] sm:$0xf]
  %v59 = vld [vmem:[%s4 + $0x8c] sm:$0xf]
  %v60 = vld [vmem:[%s4 + $0x90] sm:$0xf]
  %v61 = vld [vmem:[%s4 + $0x94] sm:$0xf]
  %v62 = vld [vmem:[%s4 + $0x98] sm:$0xf]
  %v63 = vld [vmem:[%s4 + $0x9c] sm:$0xf]
  %v64 = vld [vmem:[%s4 + $0xa0] sm:$0xf]
  %v65 = vld [vmem:[%s4 + $0xa4] sm:$0xf]
  %v66 = vld [vmem:[%s4 + $0xa8] sm:$0xf]
  %v67 = vld [vmem:[%s4 + $0xac] sm:$0xf]
  %v68 = vld [vmem:[%s4 + $0xb0] sm:$0xf]
  %v69 = vld [vmem:[%s4 + $0xb4] sm:$0xf]
  %v70 = vld [vmem:[%s4 + $0xb8] sm:$0xf]
  %v71 = vld [vmem:[%s4 + $0xbc] sm:$0xf]
  %v72 = vld [vmem:[%s4 + $0xc0] sm:$0xf]
  %v73 = vld [vmem:[%s4 + $0xc4] sm:$0xf]
  %v74 = vld [vmem:[%s0] sm:$0xff]
  %v75 = vld [vmem:[%s0 + $0x8] sm:$0xff]
  %v76 = vld [vmem:[%s0 + $0x10] sm:$0xff]
  %v77 = vld [vmem:[%s0 + $0x18] sm:$0xff]
  %v78 = vld [vmem:[%s0 + $0x20] sm:$0xff]
  %v79 = vld [vmem:[%s0 + $0x28] sm:$0xff]
  %v80 = vld [vmem:[%s0 + $0x30] sm:$0xff]
  %v81 = vld [vmem:[%s0 + $0x38] sm:$0xff]
  %v90 = vunpack.c.l.b16 %v74
  %v91 = vunpack.c.h.b16 %v74
  %v92 = vunpack.c.l.b16 %v75
  %v93 = vunpack.c.h.b16 %v75
  %v94 = vunpack.c.l.b16 %v76
  %v95 = vunpack.c.h.b16 %v76
  %v96 = vunpack.c.l.b16 %v77
  %v97 = vunpack.c.h.b16 %v77
  %v98 = vunpack.c.l.b16 %v78
  %v99 = vunpack.c.h.b16 %v78
  %v100 = vunpack.c.l.b16 %v79
  %v101 = vunpack.c.h.b16 %v79
  %v102 = vunpack.c.l.b16 %v80
  %v103 = vunpack.c.h.b16 %v80
  %v104 = vunpack.c.l.b16 %v81
  %v105 = vunpack.c.h.b16 %v81
  %v106 = vpack.c.b16 %v94, %v90
  %v107 = vpack.c.b16 %v95, %v91
  %v108 = vpack.c.b16 %v96, %v92
  %v109 = vpack.c.b16 %v97, %v93
  %v110 = vpack.c.b16 %v102, %v98
  %v111 = vpack.c.b16 %v103, %v99
  %v112 = vpack.c.b16 %v104, %v100
  %v113 = vpack.c.b16 %v105, %v101
  %v170 = vunpack.c.l.b16 %v24
  %v171 = vunpack.c.l.b16 %v25
  %v172 = vunpack.c.l.b16 %v26
  %v173 = vunpack.c.l.b16 %v27
  %v174 = vunpack.c.l.b16 %v28
  %v175 = vunpack.c.l.b16 %v29
  %v176 = vunpack.c.l.b16 %v30
  %v177 = vunpack.c.l.b16 %v31
  %v178 = vunpack.c.l.b16 %v32
  %v179 = vunpack.c.l.b16 %v33
  %v180 = vunpack.c.l.b16 %v34
  %v181 = vunpack.c.l.b16 %v35
  %v182 = vunpack.c.l.b16 %v36
  %v183 = vunpack.c.l.b16 %v37
  %v184 = vunpack.c.l.b16 %v38
  %v185 = vunpack.c.l.b16 %v39
  %v186 = vunpack.c.l.b16 %v40
  %v187 = vunpack.c.l.b16 %v41
  %v188 = vunpack.c.l.b16 %v42
  %v189 = vunpack.c.l.b16 %v43
  %v190 = vunpack.c.l.b16 %v44
  %v191 = vunpack.c.l.b16 %v45
  %v192 = vunpack.c.l.b16 %v46
  %v193 = vunpack.c.l.b16 %v47
  %v194 = vunpack.c.l.b16 %v48
  %v195 = vunpack.c.l.b16 %v49
  %v196 = vunpack.c.l.b16 %v50
  %v197 = vunpack.c.l.b16 %v51
  %v198 = vunpack.c.l.b16 %v52
  %v199 = vunpack.c.l.b16 %v53
  %v200 = vunpack.c.l.b16 %v54
  %v201 = vunpack.c.l.b16 %v55
  %v202 = vunpack.c.l.b16 %v56
  %v203 = vunpack.c.l.b16 %v57
  %v204 = vunpack.c.l.b16 %v58
  %v205 = vunpack.c.l.b16 %v59
  %v206 = vunpack.c.l.b16 %v60
  %v207 = vunpack.c.l.b16 %v61
  %v208 = vunpack.c.l.b16 %v62
  %v209 = vunpack.c.l.b16 %v63
  %v210 = vunpack.c.l.b16 %v64
  %v211 = vunpack.c.l.b16 %v65
  %v212 = vunpack.c.l.b16 %v66
  %v213 = vunpack.c.l.b16 %v67
  %v214 = vunpack.c.l.b16 %v68
  %v215 = vunpack.c.l.b16 %v69
  %v216 = vunpack.c.l.b16 %v70
  %v217 = vunpack.c.l.b16 %v71
  %v218 = vunpack.c.l.b16 %v72
  %v219 = vunpack.c.l.b16 %v73
  %v220 = vpack.c.b16 %v171, %v170
  %v221 = vpack.c.b16 %v173, %v172
  %v222 = vpack.c.b16 %v175, %v174
  %v223 = vpack.c.b16 %v177, %v176
  %v224 = vpack.c.b16 %v179, %v178
  %v225 = vpack.c.b16 %v181, %v180
  %v226 = vpack.c.b16 %v183, %v182
  %v227 = vpack.c.b16 %v185, %v184
  %v228 = vpack.c.b16 %v187, %v186
  %v229 = vpack.c.b16 %v189, %v188
  %v230 = vpack.c.b16 %v191, %v190
  %v231 = vpack.c.b16 %v193, %v192
  %v232 = vpack.c.b16 %v195, %v194
  %v233 = vpack.c.b16 %v197, %v196
  %v234 = vpack.c.b16 %v199, %v198
  %v235 = vpack.c.b16 %v201, %v200
  %v236 = vpack.c.b16 %v203, %v202
  %v237 = vpack.c.b16 %v205, %v204
  %v238 = vpack.c.b16 %v207, %v206
  %v239 = vpack.c.b16 %v209, %v208
  %v240 = vpack.c.b16 %v211, %v210
  %v241 = vpack.c.b16 %v213, %v212
  %v242 = vpack.c.b16 %v215, %v214
  %v243 = vpack.c.b16 %v217, %v216
  %v244 = vpack.c.b16 %v219, %v218
  %vm270 = vcmask 130048
  %v272 = vsel %vm270, %v109, 0
  %v275 = vsel %vm270, %v113, 0
  %277 = vmatprep.subr.bf16.mxu0 0
  %278 = vmatpush1.bf16.msra.mxu0 %v220
  %279 = vmatprep.subr.bf16.mxu0 0
  %280 = vmatpush1.bf16.msra.mxu0 %v221
  %281 = vmatprep.subr.bf16.mxu0 0
  %282 = vmatpush1.bf16.msra.mxu0 %v222
  %283 = vmatprep.subr.bf16.mxu0 0
  %284 = vmatpush1.bf16.msra.mxu0 %v223
  %285 = vmatprep.subr.bf16.mxu0 0
  %286 = vmatpush1.bf16.msra.mxu0 %v224
  %287 = vmatprep.subr.bf16.mxu0 0
  %288 = vmatpush1.bf16.msra.mxu0 %v225
  %289 = vmatprep.subr.bf16.mxu0 0
  %290 = vmatpush1.bf16.msra.mxu0 %v226
  %291 = vmatprep.subr.bf16.mxu0 0
  %292 = vmatpush1.bf16.msra.mxu0 %v227
  %293 = vmatprep.subr.bf16.mxu0 0
  %294 = vmatpush1.bf16.msra.mxu0 %v228
  %295 = vmatprep.subr.bf16.mxu0 0
  %296 = vmatpush1.bf16.msra.mxu0 %v229
  %297 = vmatprep.subr.bf16.mxu0 0
  %298 = vmatpush1.bf16.msra.mxu0 %v230
  %299 = vmatprep.subr.bf16.mxu0 0
  %300 = vmatpush1.bf16.msra.mxu0 %v231
  %301 = vmatprep.subr.bf16.mxu0 0
  %302 = vmatpush1.bf16.msra.mxu0 %v232
  %303 = vmatprep.subr.bf16.mxu0 0
  %304 = vmatpush1.bf16.msra.mxu0 %v233
  %305 = vmatprep.subr.bf16.mxu0 0
  %306 = vmatpush1.bf16.msra.mxu0 %v234
  %307 = vmatprep.subr.bf16.mxu0 0
  %308 = vmatpush1.bf16.msra.mxu0 %v235
  %309 = vmatprep.mubr.bf16.mxu0 %v107
  %310 = vmatmul.mubr.bf16.gmra.mrb[0].mxu0 %v106
  %v311 = vpop.f32.mrb[0].mxu0
  %v312 = vadd.f32 0.0, %v311
  %v313 = vpop.f32.mrb[0].mxu0
  %v314 = vpop.f32.mrb[0].mxu0
  %v315 = vadd.f32 0.0, %v314
  %v316 = vpop.f32.mrb[0].mxu0
  %317 = vmatprep.mubr.bf16.mxu0 %v111
  %318 = vmatmul.mubr.bf16.gmra.mrb[0].mxu0 %v110
  %v319 = vpop.f32.mrb[0].mxu0
  %v320 = vadd.f32 0.0, %v319
  %v321 = vpop.f32.mrb[0].mxu0
  %v322 = vpop.f32.mrb[0].mxu0
  %v323 = vadd.f32 0.0, %v322
  %v324 = vpop.f32.mrb[0].mxu0
  %325 = vdwg.mxu0
  %326 = vmatprep.subr.bf16.mxu0 0
  %327 = vmatpush1.bf16.msra.mxu0 %v236
  %328 = vmatprep.subr.bf16.mxu0 0
  %329 = vmatpush1.bf16.msra.mxu0 %v237
  %330 = vmatprep.subr.bf16.mxu0 0
  %331 = vmatpush1.bf16.msra.mxu0 %v238
  %332 = vmatprep.subr.bf16.mxu0 0
  %333 = vmatpush1.bf16.msra.mxu0 %v239
  %334 = vmatprep.subr.bf16.mxu0 0
  %335 = vmatpush1.bf16.msra.mxu0 %v240
  %336 = vmatprep.subr.bf16.mxu0 0
  %337 = vmatpush1.bf16.msra.mxu0 %v241
  %338 = vmatprep.subr.bf16.mxu0 0
  %339 = vmatpush1.bf16.msra.mxu0 %v242
  %340 = vmatprep.subr.bf16.mxu0 0
  %341 = vmatpush1.bf16.msra.mxu0 %v243
  %342 = vmatprep.subr.bf16.mxu0 0
  %343 = vmatpush1.bf16.msra.mxu0 %v244
  %344 = vmatprep.subr.bf16.mxu0 0
  %345 = vmatpush1.bf16.msra.mxu0 0
  %346 = vmatprep.subr.bf16.mxu0 0
  %347 = vmatpush1.bf16.msra.mxu0 0
  %348 = vmatprep.subr.bf16.mxu0 0
  %349 = vmatpush1.bf16.msra.mxu0 0
  %350 = vmatprep.subr.bf16.mxu0 0
  %351 = vmatpush1.bf16.msra.mxu0 0
  %352 = vmatprep.subr.bf16.mxu0 0
  %353 = vmatpush1.bf16.msra.mxu0 0
  %354 = vmatprep.subr.bf16.mxu0 0
  %355 = vmatpush1.bf16.msra.mxu0 0
  %356 = vmatprep.subr.bf16.mxu0 0
  %357 = vmatpush1.bf16.msra.mxu0 0
  %358 = vmatprep.mubr.bf16.mxu0 %v272
  %359 = vmatmul.mubr.bf16.gmra.mrb[0].mxu0 %v108
  %v360 = vpop.f32.mrb[0].mxu0
  %v361 = vadd.f32 %v312, %v360
  %v362 = vpop.f32.mrb[0].mxu0
  %v363 = vpop.f32.mrb[0].mxu0
  %v364 = vadd.f32 %v315, %v363
  %v365 = vpop.f32.mrb[0].mxu0
  %366 = vmatprep.mubr.bf16.mxu0 %v275
  %367 = vmatmul.mubr.bf16.gmra.mrb[0].mxu0 %v112
  %v368 = vpop.f32.mrb[0].mxu0
  %v369 = vadd.f32 %v320, %v368
  %v370 = vpop.f32.mrb[0].mxu0
  %v371 = vpop.f32.mrb[0].mxu0
  %v372 = vadd.f32 %v323, %v371
  %v373 = vpop.f32.mrb[0].mxu0
  %374 = vdwg.mxu0
  %v375 = vld [vmem:[%s1] sm:$0xff]
  %v376 = vld [vmem:[%s1 + $0x8] sm:$0xff]
  %v377 = vld [vmem:[%s1 + $0x10] sm:$0xff]
  %v378 = vld [vmem:[%s1 + $0x18] sm:$0xff]
  %v379 = vld [vmem:[%s1 + $0x20] sm:$0xff]
  %v380 = vld [vmem:[%s1 + $0x28] sm:$0xff]
  %v381 = vld [vmem:[%s1 + $0x30] sm:$0xff]
  %v382 = vld [vmem:[%s1 + $0x38] sm:$0xff]
  %v391 = vunpack.c.l.b16 %v375
  %v392 = vunpack.c.h.b16 %v375
  %v393 = vunpack.c.l.b16 %v376
  %v394 = vunpack.c.h.b16 %v376
  %v395 = vunpack.c.l.b16 %v377
  %v396 = vunpack.c.h.b16 %v377
  %v397 = vunpack.c.l.b16 %v378
  %v398 = vunpack.c.h.b16 %v378
  %v399 = vunpack.c.l.b16 %v379
  %v400 = vunpack.c.h.b16 %v379
  %v401 = vunpack.c.l.b16 %v380
  %v402 = vunpack.c.h.b16 %v380
  %v403 = vunpack.c.l.b16 %v381
  %v404 = vunpack.c.h.b16 %v381
  %v405 = vunpack.c.l.b16 %v382
  %v406 = vunpack.c.h.b16 %v382
  %v407 = vpack.c.b16 %v395, %v391
  %v408 = vpack.c.b16 %v396, %v392
  %v409 = vpack.c.b16 %v397, %v393
  %v410 = vpack.c.b16 %v398, %v394
  %v411 = vpack.c.b16 %v403, %v399
  %v412 = vpack.c.b16 %v404, %v400
  %v413 = vpack.c.b16 %v405, %v401
  %v414 = vpack.c.b16 %v406, %v402
  %v422 = vsel %vm270, %v410, 0
  %v425 = vsel %vm270, %v414, 0
  %427 = vmatprep.subr.bf16.mxu0 0
  %428 = vmatpush1.bf16.msra.mxu0 %v220
  %429 = vmatprep.subr.bf16.mxu0 0
  %430 = vmatpush1.bf16.msra.mxu0 %v221
  %431 = vmatprep.subr.bf16.mxu0 0
  %432 = vmatpush1.bf16.msra.mxu0 %v222
  %433 = vmatprep.subr.bf16.mxu0 0
  %434 = vmatpush1.bf16.msra.mxu0 %v223
  %435 = vmatprep.subr.bf16.mxu0 0
  %436 = vmatpush1.bf16.msra.mxu0 %v224
  %437 = vmatprep.subr.bf16.mxu0 0
  %438 = vmatpush1.bf16.msra.mxu0 %v225
  %439 = vmatprep.subr.bf16.mxu0 0
  %440 = vmatpush1.bf16.msra.mxu0 %v226
  %441 = vmatprep.subr.bf16.mxu0 0
  %442 = vmatpush1.bf16.msra.mxu0 %v227
  %443 = vmatprep.subr.bf16.mxu0 0
  %444 = vmatpush1.bf16.msra.mxu0 %v228
  %445 = vmatprep.subr.bf16.mxu0 0
  %446 = vmatpush1.bf16.msra.mxu0 %v229
  %447 = vmatprep.subr.bf16.mxu0 0
  %448 = vmatpush1.bf16.msra.mxu0 %v230
  %449 = vmatprep.subr.bf16.mxu0 0
  %450 = vmatpush1.bf16.msra.mxu0 %v231
  %451 = vmatprep.subr.bf16.mxu0 0
  %452 = vmatpush1.bf16.msra.mxu0 %v232
  %453 = vmatprep.subr.bf16.mxu0 0
  %454 = vmatpush1.bf16.msra.mxu0 %v233
  %455 = vmatprep.subr.bf16.mxu0 0
  %456 = vmatpush1.bf16.msra.mxu0 %v234
  %457 = vmatprep.subr.bf16.mxu0 0
  %458 = vmatpush1.bf16.msra.mxu0 %v235
  %459 = vmatprep.mubr.bf16.mxu0 %v408
  %460 = vmatmul.mubr.bf16.gmra.mrb[0].mxu0 %v407
  %v461 = vpop.f32.mrb[0].mxu0
  %v462 = vadd.f32 0.0, %v461
  %v463 = vpop.f32.mrb[0].mxu0
  %v464 = vpop.f32.mrb[0].mxu0
  %v465 = vadd.f32 0.0, %v464
  %v466 = vpop.f32.mrb[0].mxu0
  %467 = vmatprep.mubr.bf16.mxu0 %v412
  %468 = vmatmul.mubr.bf16.gmra.mrb[0].mxu0 %v411
  %v469 = vpop.f32.mrb[0].mxu0
  %v470 = vadd.f32 0.0, %v469
  %v471 = vpop.f32.mrb[0].mxu0
  %v472 = vpop.f32.mrb[0].mxu0
  %v473 = vadd.f32 0.0, %v472
  %v474 = vpop.f32.mrb[0].mxu0
  %475 = vdwg.mxu0
  %476 = vmatprep.subr.bf16.mxu0 0
  %477 = vmatpush1.bf16.msra.mxu0 %v236
  %478 = vmatprep.subr.bf16.mxu0 0
  %479 = vmatpush1.bf16.msra.mxu0 %v237
  %480 = vmatprep.subr.bf16.mxu0 0
  %481 = vmatpush1.bf16.msra.mxu0 %v238
  %482 = vmatprep.subr.bf16.mxu0 0
  %483 = vmatpush1.bf16.msra.mxu0 %v239
  %484 = vmatprep.subr.bf16.mxu0 0
  %485 = vmatpush1.bf16.msra.mxu0 %v240
  %486 = vmatprep.subr.bf16.mxu0 0
  %487 = vmatpush1.bf16.msra.mxu0 %v241
  %488 = vmatprep.subr.bf16.mxu0 0
  %489 = vmatpush1.bf16.msra.mxu0 %v242
  %490 = vmatprep.subr.bf16.mxu0 0
  %491 = vmatpush1.bf16.msra.mxu0 %v243
  %492 = vmatprep.subr.bf16.mxu0 0
  %493 = vmatpush1.bf16.msra.mxu0 %v244
  %494 = vmatprep.subr.bf16.mxu0 0
  %495 = vmatpush1.bf16.msra.mxu0 0
  %496 = vmatprep.subr.bf16.mxu0 0
  %497 = vmatpush1.bf16.msra.mxu0 0
  %498 = vmatprep.subr.bf16.mxu0 0
  %499 = vmatpush1.bf16.msra.mxu0 0
  %500 = vmatprep.subr.bf16.mxu0 0
  %501 = vmatpush1.bf16.msra.mxu0 0
  %502 = vmatprep.subr.bf16.mxu0 0
  %503 = vmatpush1.bf16.msra.mxu0 0
  %504 = vmatprep.subr.bf16.mxu0 0
  %505 = vmatpush1.bf16.msra.mxu0 0
  %506 = vmatprep.subr.bf16.mxu0 0
  %507 = vmatpush1.bf16.msra.mxu0 0
  %508 = vmatprep.mubr.bf16.mxu0 %v422
  %509 = vmatmul.mubr.bf16.gmra.mrb[0].mxu0 %v409
  %v510 = vpop.f32.mrb[0].mxu0
  %v511 = vadd.f32 %v462, %v510
  %v512 = vpop.f32.mrb[0].mxu0
  %v513 = vpop.f32.mrb[0].mxu0
  %v514 = vadd.f32 %v465, %v513
  %v515 = vpop.f32.mrb[0].mxu0
  %516 = vmatprep.mubr.bf16.mxu0 %v425
  %517 = vmatmul.mubr.bf16.gmra.mrb[0].mxu0 %v413
  %v518 = vpop.f32.mrb[0].mxu0
  %v519 = vadd.f32 %v470, %v518
  %v520 = vpop.f32.mrb[0].mxu0
  %v521 = vpop.f32.mrb[0].mxu0
  %v522 = vadd.f32 %v473, %v521
  %v523 = vpop.f32.mrb[0].mxu0
  %524 = vdwg.mxu0
  %v525 = vld [vmem:[%s2] sm:$0xff]
  %v526 = vld [vmem:[%s2 + $0x8] sm:$0xff]
  %v527 = vld [vmem:[%s2 + $0x10] sm:$0xff]
  %v528 = vld [vmem:[%s2 + $0x18] sm:$0xff]
  %v529 = vld [vmem:[%s2 + $0x20] sm:$0xff]
  %v530 = vld [vmem:[%s2 + $0x28] sm:$0xff]
  %v531 = vld [vmem:[%s2 + $0x30] sm:$0xff]
  %v532 = vld [vmem:[%s2 + $0x38] sm:$0xff]
  %v541 = vunpack.c.l.b16 %v525
  %v542 = vunpack.c.h.b16 %v525
  %v543 = vunpack.c.l.b16 %v526
  %v544 = vunpack.c.h.b16 %v526
  %v545 = vunpack.c.l.b16 %v527
  %v546 = vunpack.c.h.b16 %v527
  %v547 = vunpack.c.l.b16 %v528
  %v548 = vunpack.c.h.b16 %v528
  %v549 = vunpack.c.l.b16 %v529
  %v550 = vunpack.c.h.b16 %v529
  %v551 = vunpack.c.l.b16 %v530
  %v552 = vunpack.c.h.b16 %v530
  %v553 = vunpack.c.l.b16 %v531
  %v554 = vunpack.c.h.b16 %v531
  %v555 = vunpack.c.l.b16 %v532
  %v556 = vunpack.c.h.b16 %v532
  %v557 = vpack.c.b16 %v545, %v541
  %v558 = vpack.c.b16 %v546, %v542
  %v559 = vpack.c.b16 %v547, %v543
  %v560 = vpack.c.b16 %v548, %v544
  %v561 = vpack.c.b16 %v553, %v549
  %v562 = vpack.c.b16 %v554, %v550
  %v563 = vpack.c.b16 %v555, %v551
  %v564 = vpack.c.b16 %v556, %v552
  %v572 = vsel %vm270, %v560, 0
  %v575 = vsel %vm270, %v564, 0
  %577 = vmatprep.subr.bf16.mxu0 0
  %578 = vmatpush1.bf16.msra.mxu0 %v220
  %579 = vmatprep.subr.bf16.mxu0 0
  %580 = vmatpush1.bf16.msra.mxu0 %v221
  %581 = vmatprep.subr.bf16.mxu0 0
  %582 = vmatpush1.bf16.msra.mxu0 %v222
  %583 = vmatprep.subr.bf16.mxu0 0
  %584 = vmatpush1.bf16.msra.mxu0 %v223
  %585 = vmatprep.subr.bf16.mxu0 0
  %586 = vmatpush1.bf16.msra.mxu0 %v224
  %587 = vmatprep.subr.bf16.mxu0 0
  %588 = vmatpush1.bf16.msra.mxu0 %v225
  %589 = vmatprep.subr.bf16.mxu0 0
  %590 = vmatpush1.bf16.msra.mxu0 %v226
  %591 = vmatprep.subr.bf16.mxu0 0
  %592 = vmatpush1.bf16.msra.mxu0 %v227
  %593 = vmatprep.subr.bf16.mxu0 0
  %594 = vmatpush1.bf16.msra.mxu0 %v228
  %595 = vmatprep.subr.bf16.mxu0 0
  %596 = vmatpush1.bf16.msra.mxu0 %v229
  %597 = vmatprep.subr.bf16.mxu0 0
  %598 = vmatpush1.bf16.msra.mxu0 %v230
  %599 = vmatprep.subr.bf16.mxu0 0
  %600 = vmatpush1.bf16.msra.mxu0 %v231
  %601 = vmatprep.subr.bf16.mxu0 0
  %602 = vmatpush1.bf16.msra.mxu0 %v232
  %603 = vmatprep.subr.bf16.mxu0 0
  %604 = vmatpush1.bf16.msra.mxu0 %v233
  %605 = vmatprep.subr.bf16.mxu0 0
  %606 = vmatpush1.bf16.msra.mxu0 %v234
  %607 = vmatprep.subr.bf16.mxu0 0
  %608 = vmatpush1.bf16.msra.mxu0 %v235
  %609 = vmatprep.mubr.bf16.mxu0 %v558
  %610 = vmatmul.mubr.bf16.gmra.mrb[0].mxu0 %v557
  %v611 = vpop.f32.mrb[0].mxu0
  %v612 = vadd.f32 0.0, %v611
  %v613 = vpop.f32.mrb[0].mxu0
  %v614 = vpop.f32.mrb[0].mxu0
  %v615 = vadd.f32 0.0, %v614
  %v616 = vpop.f32.mrb[0].mxu0
  %617 = vmatprep.mubr.bf16.mxu0 %v562
  %618 = vmatmul.mubr.bf16.gmra.mrb[0].mxu0 %v561
  %v619 = vpop.f32.mrb[0].mxu0
  %v620 = vadd.f32 0.0, %v619
  %v621 = vpop.f32.mrb[0].mxu0
  %v622 = vpop.f32.mrb[0].mxu0
  %v623 = vadd.f32 0.0, %v622
  %v624 = vpop.f32.mrb[0].mxu0
  %625 = vdwg.mxu0
  %626 = vmatprep.subr.bf16.mxu0 0
  %627 = vmatpush1.bf16.msra.mxu0 %v236
  %628 = vmatprep.subr.bf16.mxu0 0
  %629 = vmatpush1.bf16.msra.mxu0 %v237
  %630 = vmatprep.subr.bf16.mxu0 0
  %631 = vmatpush1.bf16.msra.mxu0 %v238
  %632 = vmatprep.subr.bf16.mxu0 0
  %633 = vmatpush1.bf16.msra.mxu0 %v239
  %634 = vmatprep.subr.bf16.mxu0 0
  %635 = vmatpush1.bf16.msra.mxu0 %v240
  %636 = vmatprep.subr.bf16.mxu0 0
  %637 = vmatpush1.bf16.msra.mxu0 %v241
  %638 = vmatprep.subr.bf16.mxu0 0
  %639 = vmatpush1.bf16.msra.mxu0 %v242
  %640 = vmatprep.subr.bf16.mxu0 0
  %641 = vmatpush1.bf16.msra.mxu0 %v243
  %642 = vmatprep.subr.bf16.mxu0 0
  %643 = vmatpush1.bf16.msra.mxu0 %v244
  %644 = vmatprep.subr.bf16.mxu0 0
  %645 = vmatpush1.bf16.msra.mxu0 0
  %646 = vmatprep.subr.bf16.mxu0 0
  %647 = vmatpush1.bf16.msra.mxu0 0
  %648 = vmatprep.subr.bf16.mxu0 0
  %649 = vmatpush1.bf16.msra.mxu0 0
  %650 = vmatprep.subr.bf16.mxu0 0
  %651 = vmatpush1.bf16.msra.mxu0 0
  %652 = vmatprep.subr.bf16.mxu0 0
  %653 = vmatpush1.bf16.msra.mxu0 0
  %654 = vmatprep.subr.bf16.mxu0 0
  %655 = vmatpush1.bf16.msra.mxu0 0
  %656 = vmatprep.subr.bf16.mxu0 0
  %657 = vmatpush1.bf16.msra.mxu0 0
  %658 = vmatprep.mubr.bf16.mxu0 %v572
  %659 = vmatmul.mubr.bf16.gmra.mrb[0].mxu0 %v559
  %v660 = vpop.f32.mrb[0].mxu0
  %v661 = vadd.f32 %v612, %v660
  %v662 = vpop.f32.mrb[0].mxu0
  %v663 = vpop.f32.mrb[0].mxu0
  %v664 = vadd.f32 %v615, %v663
  %v665 = vpop.f32.mrb[0].mxu0
  %666 = vmatprep.mubr.bf16.mxu0 %v575
  %667 = vmatmul.mubr.bf16.gmra.mrb[0].mxu0 %v563
  %v668 = vpop.f32.mrb[0].mxu0
  %v669 = vadd.f32 %v620, %v668
  %v670 = vpop.f32.mrb[0].mxu0
  %v671 = vpop.f32.mrb[0].mxu0
  %v672 = vadd.f32 %v623, %v671
  %v673 = vpop.f32.mrb[0].mxu0
  %674 = vdwg.mxu0
  %v675 = vld [vmem:[%s3] sm:$0xff]
  %v676 = vld [vmem:[%s3 + $0x8] sm:$0xff]
  %v677 = vld [vmem:[%s3 + $0x10] sm:$0xff]
  %v678 = vld [vmem:[%s3 + $0x18] sm:$0xff]
  %v679 = vld [vmem:[%s3 + $0x20] sm:$0xff]
  %v680 = vld [vmem:[%s3 + $0x28] sm:$0xff]
  %v681 = vld [vmem:[%s3 + $0x30] sm:$0xff]
  %v682 = vld [vmem:[%s3 + $0x38] sm:$0xff]
  %v691 = vunpack.c.l.b16 %v675
  %v692 = vunpack.c.h.b16 %v675
  %v693 = vunpack.c.l.b16 %v676
  %v694 = vunpack.c.h.b16 %v676
  %v695 = vunpack.c.l.b16 %v677
  %v696 = vunpack.c.h.b16 %v677
  %v697 = vunpack.c.l.b16 %v678
  %v698 = vunpack.c.h.b16 %v678
  %v699 = vunpack.c.l.b16 %v679
  %v700 = vunpack.c.h.b16 %v679
  %v701 = vunpack.c.l.b16 %v680
  %v702 = vunpack.c.h.b16 %v680
  %v703 = vunpack.c.l.b16 %v681
  %v704 = vunpack.c.h.b16 %v681
  %v705 = vunpack.c.l.b16 %v682
  %v706 = vunpack.c.h.b16 %v682
  %v707 = vpack.c.b16 %v695, %v691
  %v708 = vpack.c.b16 %v696, %v692
  %v709 = vpack.c.b16 %v697, %v693
  %v710 = vpack.c.b16 %v698, %v694
  %v711 = vpack.c.b16 %v703, %v699
  %v712 = vpack.c.b16 %v704, %v700
  %v713 = vpack.c.b16 %v705, %v701
  %v714 = vpack.c.b16 %v706, %v702
  %v722 = vsel %vm270, %v710, 0
  %v725 = vsel %vm270, %v714, 0
  %727 = vmatprep.subr.bf16.mxu0 0
  %728 = vmatpush1.bf16.msra.mxu0 %v220
  %729 = vmatprep.subr.bf16.mxu0 0
  %730 = vmatpush1.bf16.msra.mxu0 %v221
  %731 = vmatprep.subr.bf16.mxu0 0
  %732 = vmatpush1.bf16.msra.mxu0 %v222
  %733 = vmatprep.subr.bf16.mxu0 0
  %734 = vmatpush1.bf16.msra.mxu0 %v223
  %735 = vmatprep.subr.bf16.mxu0 0
  %736 = vmatpush1.bf16.msra.mxu0 %v224
  %737 = vmatprep.subr.bf16.mxu0 0
  %738 = vmatpush1.bf16.msra.mxu0 %v225
  %739 = vmatprep.subr.bf16.mxu0 0
  %740 = vmatpush1.bf16.msra.mxu0 %v226
  %741 = vmatprep.subr.bf16.mxu0 0
  %742 = vmatpush1.bf16.msra.mxu0 %v227
  %743 = vmatprep.subr.bf16.mxu0 0
  %744 = vmatpush1.bf16.msra.mxu0 %v228
  %745 = vmatprep.subr.bf16.mxu0 0
  %746 = vmatpush1.bf16.msra.mxu0 %v229
  %747 = vmatprep.subr.bf16.mxu0 0
  %748 = vmatpush1.bf16.msra.mxu0 %v230
  %749 = vmatprep.subr.bf16.mxu0 0
  %750 = vmatpush1.bf16.msra.mxu0 %v231
  %751 = vmatprep.subr.bf16.mxu0 0
  %752 = vmatpush1.bf16.msra.mxu0 %v232
  %753 = vmatprep.subr.bf16.mxu0 0
  %754 = vmatpush1.bf16.msra.mxu0 %v233
  %755 = vmatprep.subr.bf16.mxu0 0
  %756 = vmatpush1.bf16.msra.mxu0 %v234
  %757 = vmatprep.subr.bf16.mxu0 0
  %758 = vmatpush1.bf16.msra.mxu0 %v235
  %759 = vmatprep.mubr.bf16.mxu0 %v708
  %760 = vmatmul.mubr.bf16.gmra.mrb[0].mxu0 %v707
  %v761 = vpop.f32.mrb[0].mxu0
  %v762 = vadd.f32 0.0, %v761
  %v763 = vpop.f32.mrb[0].mxu0
  %v764 = vpop.f32.mrb[0].mxu0
  %v765 = vadd.f32 0.0, %v764
  %v766 = vpop.f32.mrb[0].mxu0
  %767 = vmatprep.mubr.bf16.mxu0 %v712
  %768 = vmatmul.mubr.bf16.gmra.mrb[0].mxu0 %v711
  %v769 = vpop.f32.mrb[0].mxu0
  %v770 = vadd.f32 0.0, %v769
  %v771 = vpop.f32.mrb[0].mxu0
  %v772 = vpop.f32.mrb[0].mxu0
  %v773 = vadd.f32 0.0, %v772
  %v774 = vpop.f32.mrb[0].mxu0
  %775 = vdwg.mxu0
  %776 = vmatprep.subr.bf16.mxu0 0
  %777 = vmatpush1.bf16.msra.mxu0 %v236
  %778 = vmatprep.subr.bf16.mxu0 0
  %779 = vmatpush1.bf16.msra.mxu0 %v237
  %780 = vmatprep.subr.bf16.mxu0 0
  %781 = vmatpush1.bf16.msra.mxu0 %v238
  %782 = vmatprep.subr.bf16.mxu0 0
  %783 = vmatpush1.bf16.msra.mxu0 %v239
  %784 = vmatprep.subr.bf16.mxu0 0
  %785 = vmatpush1.bf16.msra.mxu0 %v240
  %786 = vmatprep.subr.bf16.mxu0 0
  %787 = vmatpush1.bf16.msra.mxu0 %v241
  %788 = vmatprep.subr.bf16.mxu0 0
  %789 = vmatpush1.bf16.msra.mxu0 %v242
  %790 = vmatprep.subr.bf16.mxu0 0
  %791 = vmatpush1.bf16.msra.mxu0 %v243
  %792 = vmatprep.subr.bf16.mxu0 0
  %793 = vmatpush1.bf16.msra.mxu0 %v244
  %794 = vmatprep.subr.bf16.mxu0 0
  %795 = vmatpush1.bf16.msra.mxu0 0
  %796 = vmatprep.subr.bf16.mxu0 0
  %797 = vmatpush1.bf16.msra.mxu0 0
  %798 = vmatprep.subr.bf16.mxu0 0
  %799 = vmatpush1.bf16.msra.mxu0 0
  %800 = vmatprep.subr.bf16.mxu0 0
  %801 = vmatpush1.bf16.msra.mxu0 0
  %802 = vmatprep.subr.bf16.mxu0 0
  %803 = vmatpush1.bf16.msra.mxu0 0
  %804 = vmatprep.subr.bf16.mxu0 0
  %805 = vmatpush1.bf16.msra.mxu0 0
  %806 = vmatprep.subr.bf16.mxu0 0
  %807 = vmatpush1.bf16.msra.mxu0 0
  %808 = vmatprep.mubr.bf16.mxu0 %v722
  %809 = vmatmul.mubr.bf16.gmra.mrb[0].mxu0 %v709
  %v810 = vpop.f32.mrb[0].mxu0
  %v811 = vadd.f32 %v762, %v810
  %v812 = vpop.f32.mrb[0].mxu0
  %v813 = vpop.f32.mrb[0].mxu0
  %v814 = vadd.f32 %v765, %v813
  %v815 = vpop.f32.mrb[0].mxu0
  %816 = vmatprep.mubr.bf16.mxu0 %v725
  %817 = vmatmul.mubr.bf16.gmra.mrb[0].mxu0 %v713
  %v818 = vpop.f32.mrb[0].mxu0
  %v819 = vadd.f32 %v770, %v818
  %v820 = vpop.f32.mrb[0].mxu0
  %v821 = vpop.f32.mrb[0].mxu0
  %v822 = vadd.f32 %v773, %v821
  %v823 = vpop.f32.mrb[0].mxu0
  %824 = vdwg.mxu0
  %v825 = vmax.f32 %v361, %v511
  %v826 = vmax.f32 %v364, %v514
  %v827 = vmax.f32 %v369, %v519
  %v828 = vmax.f32 %v372, %v522
  %v829 = vmax.f32 %v661, %v811
  %v830 = vmax.f32 %v664, %v814
  %v831 = vmax.f32 %v669, %v819
  %v832 = vmax.f32 %v672, %v822
  %v833 = vmax.f32 %v825, %v829
  %v834 = vmax.f32 %v826, %v830
  %v835 = vmax.f32 %v827, %v831
  %v836 = vmax.f32 %v828, %v832
  %v837 = vld [vmem:[%s5] sm:$0x1]
  %v839 = vlaneseq
  %v840 = vshrl.u32 %v839, 7
  %v841 = vsub.s32 0, %v840
  %v842 = vrot.slane %v837, %v841
  %v844 = vadd.f32 %v833, %v842
  %v845 = vadd.f32 %v834, %v842
  %v846 = vadd.f32 %v835, %v842
  %v847 = vadd.f32 %v836, %v842
  %v848 = vmax.f32 %v844, 0.0
  %v849 = vmax.f32 %v845, 0.0
  %v850 = vmax.f32 %v846, 0.0
  %v851 = vmax.f32 %v847, 0.0
  %vm852 = vcmask 261120
  %853 = vst.msk [vmem:[%s6] sm:$0xff] %vm852, %v848
  %854 = vst.msk [vmem:[%s6 + $0x8] sm:$0xff] %vm852, %v849
  %855 = vst.msk [vmem:[%s6 + $0x10] sm:$0xff] %vm852, %v850
  %856 = vst.msk [vmem:[%s6 + $0x18] sm:$0xff] %vm852, %v851
  // Predicated region
  $region26: #{myconv_forward.4} parent=0 // pred_check
    _
  $region27: #{myconv_forward.4} parent=0 // pred_check_branch
    %858 = sbr.rel (0) target = $region29
  $region28: #{myconv_forward.4} parent=0 // pred_region
    _
  $region29: #{myconv_forward.4} parent=0 // pred_fallthru
    _
  // Predicated region
  $region30: #{myconv_forward.4} parent=0 // pred_check
    _
  $region31: #{myconv_forward.4} parent=0 // pred_check_branch
    %860 = sbr.rel (0) target = $region33
  $region32: #{myconv_forward.4} parent=0 // pred_region
    _
  $region33: #{myconv_forward.4} parent=0 // pred_fallthru
    _

// kernel: myconv_forward.5
$region0: #{myconv_forward.5}
  #allocation0 [shape = 'u32[]', space=smem, size = 0x4, offset = 0x4, fixed_abs, tag = 'smem constant byte address 0x4 - core index']
  #allocation1 [shape = 'u32[144,128]{1,0:T(1,128)}', space=vmem, size = 0x12000, scoped, tag = 'internal scratch']
  %s0 = inlined_call_operand.vmem [shape: bf16[8,512], index: 0, kind: input, shape index: {}]
  %s1 = inlined_call_operand.vmem [shape: bf16[512,120], index: 1, kind: input, shape index: {}]
  %s2 = inlined_call_operand.vmem [shape: f32[1,120], index: 2, kind: input, shape index: {}]
  %s3 = inlined_call_operand.vmem [shape: bf16[120,10], index: 3, kind: input, shape index: {}]
  %s4 = inlined_call_operand.vmem [shape: f32[1,10], index: 4, kind: input, shape index: {}]
  %s5 = inlined_call_operand.vmem [shape: f32[8,10], index: 5, kind: output, shape index: {}]
  %s6 = sld [smem:[#allocation0]]
  $region30: #{myconv_forward.5} parent=0
    _
  %s8 = ssub.s32 1, %s6
  %s9 = scalar_select 0, %s8, %s6
  // Predicated region
  $region2: #{myconv_forward.5} parent=0 // pred_check
    _
  $region3: #{myconv_forward.5} parent=0 // pred_check_branch
    %11 = sbr.rel (0) target = $region5
  $region4: #{myconv_forward.5} parent=0 // pred_region
    _
  $region5: #{myconv_forward.5} parent=0 // pred_fallthru
    _
  // Predicated region
  $region6: #{myconv_forward.5} parent=0 // pred_check
    _
  $region7: #{myconv_forward.5} parent=0 // pred_check_branch
    %13 = sbr.rel (0) target = $region9
  $region8: #{myconv_forward.5} parent=0 // pred_region
    _
  $region9: #{myconv_forward.5} parent=0 // pred_fallthru
    _
  // Predicated region
  $region10: #{myconv_forward.5} parent=0 // pred_check
    _
  $region11: #{myconv_forward.5} parent=0 // pred_check_branch
    %15 = sbr.rel (0) target = $region13
  $region12: #{myconv_forward.5} parent=0 // pred_region
    _
  $region13: #{myconv_forward.5} parent=0 // pred_fallthru
    _
  // Predicated region
  $region14: #{myconv_forward.5} parent=0 // pred_check
    _
  $region15: #{myconv_forward.5} parent=0 // pred_check_branch
    %17 = sbr.rel (0) target = $region17
  $region16: #{myconv_forward.5} parent=0 // pred_region
    _
  $region17: #{myconv_forward.5} parent=0 // pred_fallthru
    _
  // Predicated region
  $region18: #{myconv_forward.5} parent=0 // pred_check
    _
  $region19: #{myconv_forward.5} parent=0 // pred_check_branch
    %19 = sbr.rel (0) target = $region21
  $region20: #{myconv_forward.5} parent=0 // pred_region
    _
  $region21: #{myconv_forward.5} parent=0 // pred_fallthru
    _
  %v21 = vld [vmem:[%s0] sm:$0xff]
  %v22 = vld [vmem:[%s0 + $0x8] sm:$0xff]
  %v23 = vld [vmem:[%s1] sm:$0xf]
  %v24 = vld [vmem:[%s1 + $0x4] sm:$0xf]
  %v25 = vld [vmem:[%s1 + $0x8] sm:$0xf]
  %v26 = vld [vmem:[%s1 + $0xc] sm:$0xf]
  %v27 = vld [vmem:[%s1 + $0x10] sm:$0xf]
  %v28 = vld [vmem:[%s1 + $0x14] sm:$0xf]
  %v29 = vld [vmem:[%s1 + $0x18] sm:$0xf]
  %v30 = vld [vmem:[%s1 + $0x1c] sm:$0xf]
  %v31 = vld [vmem:[%s1 + $0x20] sm:$0xf]
  %v32 = vld [vmem:[%s1 + $0x24] sm:$0xf]
  %v33 = vld [vmem:[%s1 + $0x28] sm:$0xf]
  %v34 = vld [vmem:[%s1 + $0x2c] sm:$0xf]
  %v35 = vld [vmem:[%s1 + $0x30] sm:$0xf]
  %v36 = vld [vmem:[%s1 + $0x34] sm:$0xf]
  %v37 = vld [vmem:[%s1 + $0x38] sm:$0xf]
  %v38 = vld [vmem:[%s1 + $0x3c] sm:$0xf]
  %v39 = vld [vmem:[%s1 + $0x40] sm:$0xf]
  %v40 = vld [vmem:[%s1 + $0x44] sm:$0xf]
  %v41 = vld [vmem:[%s1 + $0x48] sm:$0xf]
  %v42 = vld [vmem:[%s1 + $0x4c] sm:$0xf]
  %v43 = vld [vmem:[%s1 + $0x50] sm:$0xf]
  %v44 = vld [vmem:[%s1 + $0x54] sm:$0xf]
  %v45 = vld [vmem:[%s1 + $0x58] sm:$0xf]
  %v46 = vld [vmem:[%s1 + $0x5c] sm:$0xf]
  %v47 = vld [vmem:[%s1 + $0x60] sm:$0xf]
  %v48 = vld [vmem:[%s1 + $0x64] sm:$0xf]
  %v49 = vld [vmem:[%s1 + $0x68] sm:$0xf]
  %v50 = vld [vmem:[%s1 + $0x6c] sm:$0xf]
  %v51 = vld [vmem:[%s1 + $0x70] sm:$0xf]
  %v52 = vld [vmem:[%s1 + $0x74] sm:$0xf]
  %v53 = vld [vmem:[%s1 + $0x78] sm:$0xf]
  %v54 = vld [vmem:[%s1 + $0x7c] sm:$0xf]
  %v55 = vld [vmem:[%s1 + $0x80] sm:$0xf]
  %v56 = vld [vmem:[%s1 + $0x84] sm:$0xf]
  %v57 = vld [vmem:[%s1 + $0x88] sm:$0xf]
  %v58 = vld [vmem:[%s1 + $0x8c] sm:$0xf]
  %v59 = vld [vmem:[%s1 + $0x90] sm:$0xf]
  %v60 = vld [vmem:[%s1 + $0x94] sm:$0xf]
  %v61 = vld [vmem:[%s1 + $0x98] sm:$0xf]
  %v62 = vld [vmem:[%s1 + $0x9c] sm:$0xf]
  %v63 = vld [vmem:[%s1 + $0xa0] sm:$0xf]
  %v64 = vld [vmem:[%s1 + $0xa4] sm:$0xf]
  %v65 = vld [vmem:[%s1 + $0xa8] sm:$0xf]
  %v66 = vld [vmem:[%s1 + $0xac] sm:$0xf]
  %v67 = vld [vmem:[%s1 + $0xb0] sm:$0xf]
  %v68 = vld [vmem:[%s1 + $0xb4] sm:$0xf]
  %v69 = vld [vmem:[%s1 + $0xb8] sm:$0xf]
  %v70 = vld [vmem:[%s1 + $0xbc] sm:$0xf]
  %v71 = vld [vmem:[%s1 + $0xc0] sm:$0xf]
  %v72 = vld [vmem:[%s1 + $0xc4] sm:$0xf]
  %v73 = vld [vmem:[%s1 + $0xc8] sm:$0xf]
  %v74 = vld [vmem:[%s1 + $0xcc] sm:$0xf]
  %v75 = vld [vmem:[%s1 + $0xd0] sm:$0xf]
  %v76 = vld [vmem:[%s1 + $0xd4] sm:$0xf]
  %v77 = vld [vmem:[%s1 + $0xd8] sm:$0xf]
  %v78 = vld [vmem:[%s1 + $0xdc] sm:$0xf]
  %v79 = vld [vmem:[%s1 + $0xe0] sm:$0xf]
  %v80 = vld [vmem:[%s1 + $0xe4] sm:$0xf]
  %v81 = vld [vmem:[%s1 + $0xe8] sm:$0xf]
  %v82 = vld [vmem:[%s1 + $0xec] sm:$0xf]
  %v83 = vld [vmem:[%s1 + $0xf0] sm:$0xf]
  %v84 = vld [vmem:[%s1 + $0xf4] sm:$0xf]
  %v85 = vld [vmem:[%s1 + $0xf8] sm:$0xf]
  %v86 = vld [vmem:[%s1 + $0xfc] sm:$0xf]
  %v87 = vld [vmem:[%s2] sm:$0x1]
  %v89 = vlaneseq
  %v90 = vshrl.u32 %v89, 7
  %v91 = vsub.s32 0, %v90
  %v92 = vrot.slane %v87, %v91
  %v96 = vunpack.c.l.b16 %v21
  %v97 = vunpack.c.h.b16 %v21
  %v98 = vunpack.c.l.b16 %v22
  %v99 = vunpack.c.h.b16 %v22
  %v100 = vpack.c.b16 %v96, %v96
  %v101 = vpack.c.b16 %v97, %v97
  %v102 = vpack.c.b16 %v98, %v98
  %v103 = vpack.c.b16 %v99, %v99
  %v172 = vunpack.c.l.b16 %v23
  %v173 = vunpack.c.l.b16 %v24
  %v174 = vunpack.c.l.b16 %v25
  %v175 = vunpack.c.l.b16 %v26
  %v176 = vunpack.c.l.b16 %v27
  %v177 = vunpack.c.l.b16 %v28
  %v178 = vunpack.c.l.b16 %v29
  %v179 = vunpack.c.l.b16 %v30
  %v180 = vunpack.c.l.b16 %v31
  %v181 = vunpack.c.l.b16 %v32
  %v182 = vunpack.c.l.b16 %v33
  %v183 = vunpack.c.l.b16 %v34
  %v184 = vunpack.c.l.b16 %v35
  %v185 = vunpack.c.l.b16 %v36
  %v186 = vunpack.c.l.b16 %v37
  %v187 = vunpack.c.l.b16 %v38
  %v188 = vunpack.c.l.b16 %v39
  %v189 = vunpack.c.l.b16 %v40
  %v190 = vunpack.c.l.b16 %v41
  %v191 = vunpack.c.l.b16 %v42
  %v192 = vunpack.c.l.b16 %v43
  %v193 = vunpack.c.l.b16 %v44
  %v194 = vunpack.c.l.b16 %v45
  %v195 = vunpack.c.l.b16 %v46
  %v196 = vunpack.c.l.b16 %v47
  %v197 = vunpack.c.l.b16 %v48
  %v198 = vunpack.c.l.b16 %v49
  %v199 = vunpack.c.l.b16 %v50
  %v200 = vunpack.c.l.b16 %v51
  %v201 = vunpack.c.l.b16 %v52
  %v202 = vunpack.c.l.b16 %v53
  %v203 = vunpack.c.l.b16 %v54
  %v204 = vunpack.c.l.b16 %v55
  %v205 = vunpack.c.l.b16 %v56
  %v206 = vunpack.c.l.b16 %v57
  %v207 = vunpack.c.l.b16 %v58
  %v208 = vunpack.c.l.b16 %v59
  %v209 = vunpack.c.l.b16 %v60
  %v210 = vunpack.c.l.b16 %v61
  %v211 = vunpack.c.l.b16 %v62
  %v212 = vunpack.c.l.b16 %v63
  %v213 = vunpack.c.l.b16 %v64
  %v214 = vunpack.c.l.b16 %v65
  %v215 = vunpack.c.l.b16 %v66
  %v216 = vunpack.c.l.b16 %v67
  %v217 = vunpack.c.l.b16 %v68
  %v218 = vunpack.c.l.b16 %v69
  %v219 = vunpack.c.l.b16 %v70
  %v220 = vunpack.c.l.b16 %v71
  %v221 = vunpack.c.l.b16 %v72
  %v222 = vunpack.c.l.b16 %v73
  %v223 = vunpack.c.l.b16 %v74
  %v224 = vunpack.c.l.b16 %v75
  %v225 = vunpack.c.l.b16 %v76
  %v226 = vunpack.c.l.b16 %v77
  %v227 = vunpack.c.l.b16 %v78
  %v228 = vunpack.c.l.b16 %v79
  %v229 = vunpack.c.l.b16 %v80
  %v230 = vunpack.c.l.b16 %v81
  %v231 = vunpack.c.l.b16 %v82
  %v232 = vunpack.c.l.b16 %v83
  %v233 = vunpack.c.l.b16 %v84
  %v234 = vunpack.c.l.b16 %v85
  %v235 = vunpack.c.l.b16 %v86
  %v236 = vpack.c.b16 %v173, %v172
  %v237 = vpack.c.b16 %v175, %v174
  %v238 = vpack.c.b16 %v177, %v176
  %v239 = vpack.c.b16 %v179, %v178
  %v240 = vpack.c.b16 %v181, %v180
  %v241 = vpack.c.b16 %v183, %v182
  %v242 = vpack.c.b16 %v185, %v184
  %v243 = vpack.c.b16 %v187, %v186
  %v244 = vpack.c.b16 %v189, %v188
  %v245 = vpack.c.b16 %v191, %v190
  %v246 = vpack.c.b16 %v193, %v192
  %v247 = vpack.c.b16 %v195, %v194
  %v248 = vpack.c.b16 %v197, %v196
  %v249 = vpack.c.b16 %v199, %v198
  %v250 = vpack.c.b16 %v201, %v200
  %v251 = vpack.c.b16 %v203, %v202
  %v252 = vpack.c.b16 %v205, %v204
  %v253 = vpack.c.b16 %v207, %v206
  %v254 = vpack.c.b16 %v209, %v208
  %v255 = vpack.c.b16 %v211, %v210
  %v256 = vpack.c.b16 %v213, %v212
  %v257 = vpack.c.b16 %v215, %v214
  %v258 = vpack.c.b16 %v217, %v216
  %v259 = vpack.c.b16 %v219, %v218
  %v260 = vpack.c.b16 %v221, %v220
  %v261 = vpack.c.b16 %v223, %v222
  %v262 = vpack.c.b16 %v225, %v224
  %v263 = vpack.c.b16 %v227, %v226
  %v264 = vpack.c.b16 %v229, %v228
  %v265 = vpack.c.b16 %v231, %v230
  %v266 = vpack.c.b16 %v233, %v232
  %v267 = vpack.c.b16 %v235, %v234
  %300 = vmatprep.subr.bf16.mxu0 0
  %301 = vmatpush1.bf16.msra.mxu0 %v236
  %302 = vmatprep.subr.bf16.mxu0 0
  %303 = vmatpush1.bf16.msra.mxu0 %v237
  %304 = vmatprep.subr.bf16.mxu0 0
  %305 = vmatpush1.bf16.msra.mxu0 %v238
  %306 = vmatprep.subr.bf16.mxu0 0
  %307 = vmatpush1.bf16.msra.mxu0 %v239
  %308 = vmatprep.subr.bf16.mxu0 0
  %309 = vmatpush1.bf16.msra.mxu0 %v240
  %310 = vmatprep.subr.bf16.mxu0 0
  %311 = vmatpush1.bf16.msra.mxu0 %v241
  %312 = vmatprep.subr.bf16.mxu0 0
  %313 = vmatpush1.bf16.msra.mxu0 %v242
  %314 = vmatprep.subr.bf16.mxu0 0
  %315 = vmatpush1.bf16.msra.mxu0 %v243
  %316 = vmatprep.subr.bf16.mxu0 0
  %317 = vmatpush1.bf16.msra.mxu0 %v244
  %318 = vmatprep.subr.bf16.mxu0 0
  %319 = vmatpush1.bf16.msra.mxu0 %v245
  %320 = vmatprep.subr.bf16.mxu0 0
  %321 = vmatpush1.bf16.msra.mxu0 %v246
  %322 = vmatprep.subr.bf16.mxu0 0
  %323 = vmatpush1.bf16.msra.mxu0 %v247
  %324 = vmatprep.subr.bf16.mxu0 0
  %325 = vmatpush1.bf16.msra.mxu0 %v248
  %326 = vmatprep.subr.bf16.mxu0 0
  %327 = vmatpush1.bf16.msra.mxu0 %v249
  %328 = vmatprep.subr.bf16.mxu0 0
  %329 = vmatpush1.bf16.msra.mxu0 %v250
  %330 = vmatprep.subr.bf16.mxu0 0
  %331 = vmatpush1.bf16.msra.mxu0 %v251
  %332 = vmatprep.mubr.bf16.mxu0 %v101
  %333 = vmatmul.mubr.bf16.gmra.mrb[0].mxu0 %v100
  %v334 = vpop.f32.mrb[0].mxu0
  %v335 = vadd.f32 %v92, %v334
  %v336 = vpop.f32.mrb[0].mxu0
  %v337 = vpop.f32.mrb[0].mxu0
  %v338 = vpop.f32.mrb[0].mxu0
  %339 = vdwg.mxu0
  %340 = vmatprep.subr.bf16.mxu0 0
  %341 = vmatpush1.bf16.msra.mxu0 %v252
  %342 = vmatprep.subr.bf16.mxu0 0
  %343 = vmatpush1.bf16.msra.mxu0 %v253
  %344 = vmatprep.subr.bf16.mxu0 0
  %345 = vmatpush1.bf16.msra.mxu0 %v254
  %346 = vmatprep.subr.bf16.mxu0 0
  %347 = vmatpush1.bf16.msra.mxu0 %v255
  %348 = vmatprep.subr.bf16.mxu0 0
  %349 = vmatpush1.bf16.msra.mxu0 %v256
  %350 = vmatprep.subr.bf16.mxu0 0
  %351 = vmatpush1.bf16.msra.mxu0 %v257
  %352 = vmatprep.subr.bf16.mxu0 0
  %353 = vmatpush1.bf16.msra.mxu0 %v258
  %354 = vmatprep.subr.bf16.mxu0 0
  %355 = vmatpush1.bf16.msra.mxu0 %v259
  %356 = vmatprep.subr.bf16.mxu0 0
  %357 = vmatpush1.bf16.msra.mxu0 %v260
  %358 = vmatprep.subr.bf16.mxu0 0
  %359 = vmatpush1.bf16.msra.mxu0 %v261
  %360 = vmatprep.subr.bf16.mxu0 0
  %361 = vmatpush1.bf16.msra.mxu0 %v262
  %362 = vmatprep.subr.bf16.mxu0 0
  %363 = vmatpush1.bf16.msra.mxu0 %v263
  %364 = vmatprep.subr.bf16.mxu0 0
  %365 = vmatpush1.bf16.msra.mxu0 %v264
  %366 = vmatprep.subr.bf16.mxu0 0
  %367 = vmatpush1.bf16.msra.mxu0 %v265
  %368 = vmatprep.subr.bf16.mxu0 0
  %369 = vmatpush1.bf16.msra.mxu0 %v266
  %370 = vmatprep.subr.bf16.mxu0 0
  %371 = vmatpush1.bf16.msra.mxu0 %v267
  %372 = vmatprep.mubr.bf16.mxu0 %v103
  %373 = vmatmul.mubr.bf16.gmra.mrb[0].mxu0 %v102
  %v374 = vpop.f32.mrb[0].mxu0
  %v375 = vadd.f32 %v335, %v374
  %v376 = vpop.f32.mrb[0].mxu0
  %v377 = vpop.f32.mrb[0].mxu0
  %v378 = vpop.f32.mrb[0].mxu0
  %379 = vdwg.mxu0
  %v380 = vmax.f32 %v375, 0.0
  %v381 = vpack.c.bf16 %v380, %v380
  %v382 = vld [vmem:[%s3] sm:$0xf]
  %v383 = vld [vmem:[%s3 + $0x4] sm:$0xf]
  %v384 = vld [vmem:[%s3 + $0x8] sm:$0xf]
  %v385 = vld [vmem:[%s3 + $0xc] sm:$0xf]
  %v386 = vld [vmem:[%s3 + $0x10] sm:$0xf]
  %v387 = vld [vmem:[%s3 + $0x14] sm:$0xf]
  %v388 = vld [vmem:[%s3 + $0x18] sm:$0xf]
  %v389 = vld [vmem:[%s3 + $0x1c] sm:$0xf]
  %v390 = vld [vmem:[%s3 + $0x20] sm:$0xf]
  %v391 = vld [vmem:[%s3 + $0x24] sm:$0xf]
  %v392 = vld [vmem:[%s3 + $0x28] sm:$0xf]
  %v393 = vld [vmem:[%s3 + $0x2c] sm:$0xf]
  %v394 = vld [vmem:[%s3 + $0x30] sm:$0xf]
  %v395 = vld [vmem:[%s3 + $0x34] sm:$0xf]
  %v396 = vld [vmem:[%s3 + $0x38] sm:$0xf]
  %v397 = vld [vmem:[%s4] sm:$0x1]
  %v399 = vlaneseq
  %v400 = vshrl.u32 %v399, 7
  %v401 = vsub.s32 0, %v400
  %v402 = vrot.slane %v397, %v401
  %v419 = vunpack.c.l.b16 %v382
  %v420 = vunpack.c.l.b16 %v383
  %v421 = vunpack.c.l.b16 %v384
  %v422 = vunpack.c.l.b16 %v385
  %v423 = vunpack.c.l.b16 %v386
  %v424 = vunpack.c.l.b16 %v387
  %v425 = vunpack.c.l.b16 %v388
  %v426 = vunpack.c.l.b16 %v389
  %v427 = vunpack.c.l.b16 %v390
  %v428 = vunpack.c.l.b16 %v391
  %v429 = vunpack.c.l.b16 %v392
  %v430 = vunpack.c.l.b16 %v393
  %v431 = vunpack.c.l.b16 %v394
  %v432 = vunpack.c.l.b16 %v395
  %v433 = vunpack.c.l.b16 %v396
  %v434 = vpack.c.b16 %v420, %v419
  %v435 = vpack.c.b16 %v422, %v421
  %v436 = vpack.c.b16 %v424, %v423
  %v437 = vpack.c.b16 %v426, %v425
  %v438 = vpack.c.b16 %v428, %v427
  %v439 = vpack.c.b16 %v430, %v429
  %v440 = vpack.c.b16 %v432, %v431
  %v441 = vpack.c.b16 %v433, %v433
  %vm449 = vcmask 982016
  %v451 = vsel %vm449, %v381, 0
  %vm453 = vcmask 1043456
  %v455 = vsel %vm453, %v441, 0
  %457 = vmatprep.subr.bf16.mxu0 0
  %458 = vmatpush1.bf16.msra.mxu0 %v434
  %459 = vmatprep.subr.bf16.mxu0 0
  %460 = vmatpush1.bf16.msra.mxu0 %v435
  %461 = vmatprep.subr.bf16.mxu0 0
  %462 = vmatpush1.bf16.msra.mxu0 %v436
  %463 = vmatprep.subr.bf16.mxu0 0
  %464 = vmatpush1.bf16.msra.mxu0 %v437
  %465 = vmatprep.subr.bf16.mxu0 0
  %466 = vmatpush1.bf16.msra.mxu0 %v438
  %467 = vmatprep.subr.bf16.mxu0 0
  %468 = vmatpush1.bf16.msra.mxu0 %v439
  %469 = vmatprep.subr.bf16.mxu0 0
  %470 = vmatpush1.bf16.msra.mxu0 %v440
  %471 = vmatprep.subr.bf16.mxu0 0
  %472 = vmatpush1.bf16.msra.mxu0 %v455
  %473 = vmatprep.subr.bf16.mxu0 0
  %474 = vmatpush1.bf16.msra.mxu0 0
  %475 = vmatprep.subr.bf16.mxu0 0
  %476 = vmatpush1.bf16.msra.mxu0 0
  %477 = vmatprep.subr.bf16.mxu0 0
  %478 = vmatpush1.bf16.msra.mxu0 0
  %479 = vmatprep.subr.bf16.mxu0 0
  %480 = vmatpush1.bf16.msra.mxu0 0
  %481 = vmatprep.subr.bf16.mxu0 0
  %482 = vmatpush1.bf16.msra.mxu0 0
  %483 = vmatprep.subr.bf16.mxu0 0
  %484 = vmatpush1.bf16.msra.mxu0 0
  %485 = vmatprep.subr.bf16.mxu0 0
  %486 = vmatpush1.bf16.msra.mxu0 0
  %487 = vmatprep.subr.bf16.mxu0 0
  %488 = vmatpush1.bf16.msra.mxu0 0
  %489 = vmatprep.mubr.bf16.mxu0 0
  %490 = vmatmul.mubr.bf16.gmra.mrb[0].mxu0 %v451
  %v491 = vpop.f32.mrb[0].mxu0
  %v492 = vadd.f32 %v402, %v491
  %v493 = vpop.f32.mrb[0].mxu0
  %v494 = vpop.f32.mrb[0].mxu0
  %v495 = vpop.f32.mrb[0].mxu0
  %496 = vdwg.mxu0
  %v497 = vmax.f32 %v492, 0.0
  %vm498 = vcmask 80896
  %v499 = vsel %vm498, %v497, -inf
  %500 = vmax.xlane.f32.xlu0 %v499
  %v501 = vpop.xlane.xlu0 %500
  %v502 = vsub.f32 %v497, %v501
  %v503 = vmul.f32 %v502, 1.442695
  %v504 = vpow.pop %v503
  %v505 = vsel %vm498, %v504, 0.0
  %506 = vadd.xlane.f32.xlu0 %v505
  %v507 = vpop.xlane.xlu0 %506
  %v508 = vlog2.pop %v507
  %v509 = vmul.f32 %v508, 0.6931472
  %v510 = vadd.f32 %v509, %v501
  %v511 = vsub.f32 %v497, %v510
  %512 = vst.msk [vmem:[%s5] sm:$0xff] %vm498, %v511
  // Predicated region
  $region22: #{myconv_forward.5} parent=0 // pred_check
    _
  $region23: #{myconv_forward.5} parent=0 // pred_check_branch
    %514 = sbr.rel (0) target = $region25
  $region24: #{myconv_forward.5} parent=0 // pred_region
    _
  $region25: #{myconv_forward.5} parent=0 // pred_fallthru
    _
  // Predicated region
  $region26: #{myconv_forward.5} parent=0 // pred_check
    _
  $region27: #{myconv_forward.5} parent=0 // pred_check_branch
    %516 = sbr.rel (0) target = $region29
  $region28: #{myconv_forward.5} parent=0 // pred_region
    _
  $region29: #{myconv_forward.5} parent=0 // pred_fallthru
    _

</llo_original>
